<compile_context>
chip_gen: v7x
topology: tpu7x:2x2x1
jax: 0.10.0
libtpu: 0.0.40
codegen_flags: <defaults>
</compile_context>

<pallas_src>
import functools

import jax
import jax.numpy as jnp
from jax.experimental import pallas as pl
from jax.experimental.pallas import tpu as pltpu

_LANE = 128
_SUBLANE = 8
_DEFAULT_VMEM_BUDGET = 48 * 1024 * 1024   # conservative: fits v7x 64 MiB/TC


def _round_up(n, m):
  return ((n + m - 1) // m) * m


def _pad_axis(a, axis, target):
  pad = target - a.shape[axis]
  if pad == 0:
    return a
  widths = [(0, 0)] * a.ndim
  widths[axis] = (0, pad)
  return jnp.pad(a, widths)


# ----------------------------- Pallas kernel --------------------------------
def _encoder_kernel(h_true, eps, hp, weights_resident,
                    x_ref, w_in_ref, b_in_ref,
                    ln_g_ref, ln_b_ref,
                    w1_ref, b1_ref, w2_ref, b2_ref,
                    w_out_ref, b_out_ref,
                    out_ref, y_ref):
  """Grid = (batch_tiles, num_layers); residual carried in y_ref scratch."""
  l = pl.program_id(1)
  n_layers = pl.num_programs(1)

  # ---- layer 0: input projection + ReLU (residual init) ----
  @pl.when(l == 0)
  def _():
    y0 = jnp.dot(x_ref[...].astype(w_in_ref.dtype), w_in_ref[...],
                 preferred_element_type=jnp.float32)
    y_ref[...] = jnp.maximum(y0 + b_in_ref[...], 0.0)

  y = y_ref[...]                                   # (tile_b, Hp) float32

  # ---- pre-norm LayerNorm: two-pass stats (torch parity), biased variance.
  # Padded lanes of y are exactly zero; they are masked out of the variance,
  # and zero-padded gamma/beta keep padded lanes of yn exactly zero.
  inv_h = 1.0 / h_true
  mu = jnp.sum(y, axis=-1, keepdims=True) * inv_h
  d = y - mu
  if hp != h_true:
    lane = jax.lax.broadcasted_iota(jnp.int32, (1, hp), 1)
    d_stat = jnp.where(lane < h_true, d, 0.0)
  else:
    d_stat = d
  var = jnp.sum(d_stat * d_stat, axis=-1, keepdims=True) * inv_h
  inv_std = jax.lax.rsqrt(var + eps)
  yn = d * inv_std * ln_g_ref[l] + ln_b_ref[l]

  # ---- FFN + residual (f32 accumulation on the MXU) ----
  wl = l if weights_resident else 0
  h = jnp.dot(yn.astype(w1_ref.dtype), w1_ref[wl],
              preferred_element_type=jnp.float32)
  h = jnp.maximum(h + b1_ref[l], 0.0)
  # TODO(synk): dropout omitted (eval-mode identity); training-mode RNG mask not implemented.
  y = y + jnp.dot(h.astype(w2_ref.dtype), w2_ref[wl],
                  preferred_element_type=jnp.float32) + b2_ref[l]
  y_ref[...] = y

  # ---- last layer: output projection ----
  @pl.when(l == n_layers - 1)
  def _():
    out = jnp.dot(y.astype(w_out_ref.dtype), w_out_ref[...],
                  preferred_element_type=jnp.float32)
    out_ref[...] = (out + b_out_ref[...]).astype(out_ref.dtype)


# ---------------------- one-time parameter preparation -----------------------
def prepare_params(params, *, weight_dtype=jnp.bfloat16):
  """Pad all weights to lane-dense (128-multiple) shapes and cast matmul
  weights to weight_dtype.  Do this ONCE per parameter set, not per call."""
  (w_in, b_in, ln_g, ln_b, w1, b1, w2, b2, w_out, b_out) = params
  in_dim, H = w_in.shape
  L, _, F = w1.shape
  D = w_out.shape[1]
  in_p, Hp, Fp, Dp = (_round_up(v, _LANE) for v in (in_dim, H, F, D))
  f32 = jnp.float32

  def pad2(a, r, c):
    return _pad_axis(_pad_axis(a.astype(f32), 0, r), 1, c)

  return dict(
      dims=(in_dim, H, F, D, L, in_p, Hp, Fp, Dp),
      weight_dtype=weight_dtype,
      w_in=pad2(w_in, in_p, Hp).astype(weight_dtype),
      b_in=_pad_axis(b_in.reshape(1, H).astype(f32), 1, Hp),
      ln_g=_pad_axis(ln_g.astype(f32), 1, Hp).reshape(L, 1, Hp),
      ln_b=_pad_axis(ln_b.astype(f32), 1, Hp).reshape(L, 1, Hp),
      w1=_pad_axis(_pad_axis(w1.astype(f32), 1, Hp), 2, Fp).astype(weight_dtype),
      b1=_pad_axis(b1.astype(f32), 1, Fp).reshape(L, 1, Fp),
      w2=_pad_axis(_pad_axis(w2.astype(f32), 1, Fp), 2, Hp).astype(weight_dtype),
      b2=_pad_axis(b2.astype(f32), 1, Hp).reshape(L, 1, Hp),
      w_out=pad2(w_out, Hp, Dp).astype(weight_dtype),
      b_out=_pad_axis(b_out.reshape(1, D).astype(f32), 1, Dp),
  )


# ------------------------------ wrapper --------------------------------------
def transformer_like_encoder(x, prepared, *, tile_b=256, eps=1e-5,
                             vmem_limit_bytes=None, weights_resident=None):
  """x: (B, input_dim) float32.  Returns (B, dictionary_dim) float32."""
  in_dim, H, F, D, L, in_p, Hp, Fp, Dp = prepared["dims"]
  weight_dtype = prepared["weight_dtype"]
  B = x.shape[0]
  assert x.shape[1] == in_dim

  # Batch tile: sublane-aligned, large for weight reuse, but keep >= 2 tiles
  # when the batch allows it so both v7x TensorCores get work.
  Bp_min = _round_up(B, _SUBLANE)
  tile_b = max(_SUBLANE, min(_round_up(tile_b, _SUBLANE), Bp_min))
  if Bp_min // tile_b < 2 and Bp_min >= 2 * _SUBLANE:
    tile_b = _round_up((Bp_min + 1) // 2, _SUBLANE)
  Bp = _round_up(B, tile_b)

  # ---- VMEM budgeting: decide resident vs streamed FFN weight stacks -------
  wbytes = jnp.dtype(weight_dtype).itemsize
  ffn_stack = 2 * L * Hp * Fp * wbytes                    # w1 + w2 full stacks
  io_weights = (in_p * Hp + Hp * Dp) * wbytes             # w_in + w_out
  vectors = (Hp + Dp + L * (3 * Hp + Fp)) * 4             # biases + LN params
  tiles = tile_b * (2 * in_p + 2 * Dp + Hp) * 4           # x/out dbuf + y scratch
  compute_headroom = 2 * tile_b * (Hp + Fp) * 4           # yn / h intermediates
  resident_need = 2 * (ffn_stack + io_weights + vectors) + tiles + compute_headroom
  streamed_need = (2 * (4 * Hp * Fp * wbytes + io_weights + vectors)
                   + tiles + compute_headroom)

  budget = _DEFAULT_VMEM_BUDGET if vmem_limit_bytes is None else vmem_limit_bytes
  if weights_resident is None:
    weights_resident = resident_need <= budget
  need = resident_need if weights_resident else streamed_need
  vmem_limit = (vmem_limit_bytes if vmem_limit_bytes is not None
                else min(budget, max(need + (4 << 20), 24 << 20)))
  # TODO(synk): if streamed_need still exceeds the budget (very large H/F), an
  # inner FFN-dim tiling grid axis would be needed; not implemented here.

  xp = _pad_axis(_pad_axis(x.astype(jnp.float32), 1, in_p), 0, Bp)

  kern = functools.partial(_encoder_kernel, int(H), eps, int(Hp),
                           bool(weights_resident))

  invariant2 = lambda s: pl.BlockSpec(s, lambda i, l: (0, 0))
  stack3 = lambda s: pl.BlockSpec(s, lambda i, l: (0, 0, 0))
  if weights_resident:
    w1_spec = stack3((L, Hp, Fp))
    w2_spec = stack3((L, Fp, Hp))
  else:
    w1_spec = pl.BlockSpec((1, Hp, Fp), lambda i, l: (l, 0, 0))
    w2_spec = pl.BlockSpec((1, Fp, Hp), lambda i, l: (l, 0, 0))

  grid_spec = pltpu.PrefetchScalarGridSpec(
      num_scalar_prefetch=0,
      grid=(Bp // tile_b, L),
      in_specs=[
          pl.BlockSpec((tile_b, in_p), lambda i, l: (i, 0)),   # x (batch tiled)
          invariant2((in_p, Hp)), invariant2((1, Hp)),         # input layer
          stack3((L, 1, Hp)), stack3((L, 1, Hp)),              # LN gamma / beta
          w1_spec, stack3((L, 1, Fp)),                         # FFN w1 / b1
          w2_spec, stack3((L, 1, Hp)),                         # FFN w2 / b2
          invariant2((Hp, Dp)), invariant2((1, Dp)),           # output layer
      ],
      out_specs=pl.BlockSpec((tile_b, Dp), lambda i, l: (i, 0)),
      scratch_shapes=[pltpu.VMEM((tile_b, Hp), jnp.float32)],  # residual y
  )

  out = pl.pallas_call(
      kern,
      out_shape=jax.ShapeDtypeStruct((Bp, Dp), jnp.float32),
      grid_spec=grid_spec,
      compiler_params=pltpu.CompilerParams(
          dimension_semantics=("parallel", "arbitrary"),
          vmem_limit_bytes=int(vmem_limit)),
  )(xp, prepared["w_in"], prepared["b_in"],
    prepared["ln_g"], prepared["ln_b"],
    prepared["w1"], prepared["b1"], prepared["w2"], prepared["b2"],
    prepared["w_out"], prepared["b_out"])

  return out[:B, :D]


# ------------------------- deterministic params -------------------------------
def init_params(key, input_dim, dictionary_dim, hidden_dim, hidden_ff, num_layers):
  ks = jax.random.split(key, 10)
  s = 0.05
  w_in = s * jax.random.normal(ks[0], (input_dim, hidden_dim), jnp.float32)
  b_in = s * jax.random.normal(ks[1], (1, hidden_dim), jnp.float32)
  ln_g = jnp.ones((num_layers, hidden_dim), jnp.float32)
  ln_b = jnp.zeros((num_layers, hidden_dim), jnp.float32)
  w1 = s * jax.random.normal(ks[2], (num_layers, hidden_dim, hidden_ff), jnp.float32)
  b1 = s * jax.random.normal(ks[3], (num_layers, hidden_ff), jnp.float32)
  w2 = s * jax.random.normal(ks[4], (num_layers, hidden_ff, hidden_dim), jnp.float32)
  b2 = s * jax.random.normal(ks[5], (num_layers, hidden_dim), jnp.float32)
  w_out = s * jax.random.normal(ks[6], (hidden_dim, dictionary_dim), jnp.float32)
  b_out = s * jax.random.normal(ks[7], (1, dictionary_dim), jnp.float32)
  return (w_in, b_in, ln_g, ln_b, w1, b1, w2, b2, w_out, b_out)


# ------------------------------ JAX reference ---------------------------------
def reference(x, params, eps=1e-5):
  (w_in, b_in, ln_g, ln_b, w1, b1, w2, b2, w_out, b_out) = params
  y = jnp.maximum(x @ w_in + b_in, 0.0)
  for l in range(w1.shape[0]):
    mu = jnp.mean(y, axis=-1, keepdims=True)
    var = jnp.mean((y - mu) ** 2, axis=-1, keepdims=True)
    n = (y - mu) / jnp.sqrt(var + eps) * ln_g[l] + ln_b[l]
    y = y + jnp.maximum(n @ w1[l] + b1[l], 0.0) @ w2[l] + b2[l]
  return y @ w_out + b_out


if __name__ == "__main__":
  # Sizes consistent with the module's constructor defaults; large enough batch
  # to exercise two parallel batch tiles.
  B = 256
  INPUT_DIM, DICT_DIM = 16, 16
  HIDDEN, FF, NUM_LAYERS = 64, 128, 6

  key = jax.random.PRNGKey(0)
  kx, kp = jax.random.split(key)
  x = jax.random.normal(kx, (B, INPUT_DIM), jnp.float32)
  params = init_params(kp, INPUT_DIM, DICT_DIM, HIDDEN, FF, NUM_LAYERS)

  ref = reference(x, params)

  # f32 weights: tight correctness check vs reference (resident-weight path).
  prep_f32 = prepare_params(params, weight_dtype=jnp.float32)
  out = jax.block_until_ready(transformer_like_encoder(x, prep_f32))
  assert out.shape == (B, DICT_DIM)
  assert jnp.max(jnp.abs(out - ref)) < 1e-4, "f32 kernel mismatch vs reference"

  # Default bf16 matmul weights with f32 accumulation; looser tolerance.
  prep_bf16 = prepare_params(params)
  out_bf16 = jax.block_until_ready(transformer_like_encoder(x, prep_bf16))
  assert jnp.max(jnp.abs(out_bf16 - ref)) < 5e-2, "bf16 kernel mismatch vs reference"

  # Streamed-weight fallback path (used when the FFN stack doesn't fit VMEM).
  out_stream = jax.block_until_ready(
      transformer_like_encoder(x, prep_bf16, weights_resident=False))
  assert jnp.max(jnp.abs(out_stream - ref)) < 5e-2, "streamed kernel mismatch"

  print("KERNEL_OK")
</pallas_src>

<mosaic_0001>
module attributes {stable_mosaic.version = 11 : i64} {
  func.func @_encoder_kernel(%arg0: i32, %arg1: i32, %arg2: memref<128x128xf32, #tpu.memory_space<vmem>>, %arg3: memref<128x128xf32, #tpu.memory_space<vmem>>, %arg4: memref<1x128xf32, #tpu.memory_space<vmem>>, %arg5: memref<6x1x128xf32, #tpu.memory_space<vmem>>, %arg6: memref<6x1x128xf32, #tpu.memory_space<vmem>>, %arg7: memref<6x128x128xf32, #tpu.memory_space<vmem>>, %arg8: memref<6x1x128xf32, #tpu.memory_space<vmem>>, %arg9: memref<6x128x128xf32, #tpu.memory_space<vmem>>, %arg10: memref<6x1x128xf32, #tpu.memory_space<vmem>>, %arg11: memref<128x128xf32, #tpu.memory_space<vmem>>, %arg12: memref<1x128xf32, #tpu.memory_space<vmem>>, %arg13: memref<128x128xf32, #tpu.memory_space<vmem>>, %arg14: memref<128x128xf32, #tpu.memory_space<vmem>>) attributes {dimension_semantics = [#tpu.dimension_semantics<parallel>, #tpu.dimension_semantics<arbitrary>], iteration_bounds = array<i64: 2, 6>, scalar_prefetch = 0 : i64, scratch_operands = 1 : i64, tpu.core_type = #tpu.core_type<tc>, window_params = [{transform_indices = @transform_0, window_bounds = array<i64: 128, 128>}, {pipeline_mode = #tpu.pipeline_mode<synchronous>, transform_indices = @transform_1, window_bounds = array<i64: 128, 128>}, {pipeline_mode = #tpu.pipeline_mode<synchronous>, transform_indices = @transform_2, window_bounds = array<i64: 1, 128>}, {pipeline_mode = #tpu.pipeline_mode<synchronous>, transform_indices = @transform_3, window_bounds = array<i64: 6, 1, 128>}, {pipeline_mode = #tpu.pipeline_mode<synchronous>, transform_indices = @transform_4, window_bounds = array<i64: 6, 1, 128>}, {pipeline_mode = #tpu.pipeline_mode<synchronous>, transform_indices = @transform_5, window_bounds = array<i64: 6, 128, 128>}, {pipeline_mode = #tpu.pipeline_mode<synchronous>, transform_indices = @transform_6, window_bounds = array<i64: 6, 1, 128>}, {pipeline_mode = #tpu.pipeline_mode<synchronous>, transform_indices = @transform_7, window_bounds = array<i64: 6, 128, 128>}, {pipeline_mode = #tpu.pipeline_mode<synchronous>, transform_indices = @transform_8, window_bounds = array<i64: 6, 1, 128>}, {pipeline_mode = #tpu.pipeline_mode<synchronous>, transform_indices = @transform_9, window_bounds = array<i64: 128, 128>}, {pipeline_mode = #tpu.pipeline_mode<synchronous>, transform_indices = @transform_10, window_bounds = array<i64: 1, 128>}, {transform_indices = @transform_11, window_bounds = array<i64: 128, 128>}]} {
    %c0_i32 = arith.constant 0 : i32
    %0 = arith.cmpi eq, %arg1, %c0_i32 : i32
    %1 = arith.extui %0 : i1 to i32
    %c0_i32_0 = arith.constant 0 : i32
    %2 = arith.cmpi ne, %1, %c0_i32_0 : i32
    scf.if %2 {
      %c0_25 = arith.constant 0 : index
      %c0_26 = arith.constant 0 : index
      %62 = vector.load %arg2[%c0_25, %c0_26] : memref<128x128xf32, #tpu.memory_space<vmem>>, vector<128x128xf32>
      %c0_27 = arith.constant 0 : index
      %c0_28 = arith.constant 0 : index
      %63 = vector.load %arg3[%c0_27, %c0_28] : memref<128x128xf32, #tpu.memory_space<vmem>>, vector<128x128xf32>
      %cst_29 = arith.constant dense<0.000000e+00> : vector<128x128xf32>
      %64 = tpu.matmul %62, %63, %cst_29 {dimension_numbers = #tpu.dot_dimension_numbers<[1], [0], [0], [1], [0, 0, 1, 1], [], []>} : vector<128x128xf32>, vector<128x128xf32>, vector<128x128xf32> -> vector<128x128xf32>
      %c0_30 = arith.constant 0 : index
      %c0_31 = arith.constant 0 : index
      %65 = vector.load %arg4[%c0_30, %c0_31] : memref<1x128xf32, #tpu.memory_space<vmem>>, vector<1x128xf32>
      %66 = vector.broadcast %65 : vector<1x128xf32> to vector<128x128xf32>
      %67 = arith.addf %64, %66 : vector<128x128xf32>
      %cst_32 = arith.constant 0.000000e+00 : f32
      %68 = vector.broadcast %cst_32 : f32 to vector<128x128xf32>
      %69 = arith.maximumf %67, %68 : vector<128x128xf32>
      %c0_33 = arith.constant 0 : index
      %c0_34 = arith.constant 0 : index
      %70 = vector.load %arg14[%c0_33, %c0_34] : memref<128x128xf32, #tpu.memory_space<vmem>>, vector<128x128xf32>
      tpu.vector_store %arg14[%c0_33, %c0_34], %69 {strides = array<i32>} : memref<128x128xf32, #tpu.memory_space<vmem>>, vector<128x128xf32>,
    } else {
    }
    %c0 = arith.constant 0 : index
    %c0_1 = arith.constant 0 : index
    %3 = vector.load %arg14[%c0, %c0_1] : memref<128x128xf32, #tpu.memory_space<vmem>>, vector<128x128xf32>
    %cst = arith.constant dense<0.000000e+00> : vector<128xf32>
    %4 = vector.multi_reduction <add>, %3, %cst [1] : vector<128x128xf32> to vector<128xf32>
    %5 = vector.shape_cast %4 : vector<128xf32> to vector<128x1xf32>
    %cst_2 = arith.constant 1.562500e-02 : f32
    %6 = vector.broadcast %cst_2 : f32 to vector<128x1xf32>
    %7 = arith.mulf %5, %6 : vector<128x1xf32>
    %8 = vector.broadcast %7 : vector<128x1xf32> to vector<128x128xf32>
    %9 = arith.subf %3, %8 : vector<128x128xf32>
    %10 = tpu.iota {dimensions = array<i32: 1>} : vector<1x128xi32>
    %c64_i32 = arith.constant 64 : i32
    %11 = vector.broadcast %c64_i32 : i32 to vector<1x128xi32>
    %12 = arith.cmpi slt, %10, %11 : vector<1x128xi32>
    %cst_3 = arith.constant 0.000000e+00 : f32
    %13 = vector.shape_cast %12 : vector<1x128xi1> to vector<1x128xi1>
    %14 = vector.broadcast %13 : vector<1x128xi1> to vector<128x128xi1>
    %15 = vector.broadcast %cst_3 : f32 to vector<128x128xf32>
    %16 = arith.select %14, %9, %15 : vector<128x128xi1>, vector<128x128xf32>
    %17 = arith.mulf %16, %16 : vector<128x128xf32>
    %cst_4 = arith.constant dense<0.000000e+00> : vector<128xf32>
    %18 = vector.multi_reduction <add>, %17, %cst_4 [1] : vector<128x128xf32> to vector<128xf32>
    %19 = vector.shape_cast %18 : vector<128xf32> to vector<128x1xf32>
    %cst_5 = arith.constant 1.562500e-02 : f32
    %20 = vector.broadcast %cst_5 : f32 to vector<128x1xf32>
    %21 = arith.mulf %19, %20 : vector<128x1xf32>
    %cst_6 = arith.constant 9.99999974E-6 : f32
    %22 = vector.broadcast %cst_6 : f32 to vector<128x1xf32>
    %23 = arith.addf %21, %22 : vector<128x1xf32>
    %24 = math.rsqrt %23 : vector<128x1xf32>
    %25 = vector.broadcast %24 : vector<128x1xf32> to vector<128x128xf32>
    %26 = arith.mulf %9, %25 : vector<128x128xf32>
    %27 = arith.index_cast %arg1 : i32 to index
    %c0_7 = arith.constant 0 : index
    %c0_8 = arith.constant 0 : index
    %28 = vector.load %arg5[%27, %c0_7, %c0_8] : memref<6x1x128xf32, #tpu.memory_space<vmem>>, vector<1x1x128xf32>
    %29 = vector.shape_cast %28 : vector<1x1x128xf32> to vector<1x128xf32>
    %30 = vector.broadcast %29 : vector<1x128xf32> to vector<128x128xf32>
    %31 = arith.mulf %26, %30 : vector<128x128xf32>
    %32 = arith.index_cast %arg1 : i32 to index
    %c0_9 = arith.constant 0 : index
    %c0_10 = arith.constant 0 : index
    %33 = vector.load %arg6[%32, %c0_9, %c0_10] : memref<6x1x128xf32, #tpu.memory_space<vmem>>, vector<1x1x128xf32>
    %34 = vector.shape_cast %33 : vector<1x1x128xf32> to vector<1x128xf32>
    %35 = vector.broadcast %34 : vector<1x128xf32> to vector<128x128xf32>
    %36 = arith.addf %31, %35 : vector<128x128xf32>
    %37 = arith.index_cast %arg1 : i32 to index
    %c0_11 = arith.constant 0 : index
    %c0_12 = arith.constant 0 : index
    %38 = vector.load %arg7[%37, %c0_11, %c0_12] : memref<6x128x128xf32, #tpu.memory_space<vmem>>, vector<1x128x128xf32>
    %39 = vector.shape_cast %38 : vector<1x128x128xf32> to vector<128x128xf32>
    %cst_13 = arith.constant dense<0.000000e+00> : vector<128x128xf32>
    %40 = tpu.matmul %36, %39, %cst_13 {dimension_numbers = #tpu.dot_dimension_numbers<[1], [0], [0], [1], [0, 0, 1, 1], [], []>} : vector<128x128xf32>, vector<128x128xf32>, vector<128x128xf32> -> vector<128x128xf32>
    %41 = arith.index_cast %arg1 : i32 to index
    %c0_14 = arith.constant 0 : index
    %c0_15 = arith.constant 0 : index
    %42 = vector.load %arg8[%41, %c0_14, %c0_15] : memref<6x1x128xf32, #tpu.memory_space<vmem>>, vector<1x1x128xf32>
    %43 = vector.shape_cast %42 : vector<1x1x128xf32> to vector<1x128xf32>
    %44 = vector.broadcast %43 : vector<1x128xf32> to vector<128x128xf32>
    %45 = arith.addf %40, %44 : vector<128x128xf32>
    %cst_16 = arith.constant 0.000000e+00 : f32
    %46 = vector.broadcast %cst_16 : f32 to vector<128x128xf32>
    %47 = arith.maximumf %45, %46 : vector<128x128xf32>
    %48 = arith.index_cast %arg1 : i32 to index
    %c0_17 = arith.constant 0 : index
    %c0_18 = arith.constant 0 : index
    %49 = vector.load %arg9[%48, %c0_17, %c0_18] : memref<6x128x128xf32, #tpu.memory_space<vmem>>, vector<1x128x128xf32>
    %50 = vector.shape_cast %49 : vector<1x128x128xf32> to vector<128x128xf32>
    %cst_19 = arith.constant dense<0.000000e+00> : vector<128x128xf32>
    %51 = tpu.matmul %47, %50, %cst_19 {dimension_numbers = #tpu.dot_dimension_numbers<[1], [0], [0], [1], [0, 0, 1, 1], [], []>} : vector<128x128xf32>, vector<128x128xf32>, vector<128x128xf32> -> vector<128x128xf32>
    %52 = arith.addf %3, %51 : vector<128x128xf32>
    %53 = arith.index_cast %arg1 : i32 to index
    %c0_20 = arith.constant 0 : index
    %c0_21 = arith.constant 0 : index
    %54 = vector.load %arg10[%53, %c0_20, %c0_21] : memref<6x1x128xf32, #tpu.memory_space<vmem>>, vector<1x1x128xf32>
    %55 = vector.shape_cast %54 : vector<1x1x128xf32> to vector<1x128xf32>
    %56 = vector.broadcast %55 : vector<1x128xf32> to vector<128x128xf32>
    %57 = arith.addf %52, %56 : vector<128x128xf32>
    %c0_22 = arith.constant 0 : index
    %c0_23 = arith.constant 0 : index
    %58 = vector.load %arg14[%c0_22, %c0_23] : memref<128x128xf32, #tpu.memory_space<vmem>>, vector<128x128xf32>
    tpu.vector_store %arg14[%c0_22, %c0_23], %57 {strides = array<i32>} : memref<128x128xf32, #tpu.memory_space<vmem>>, vector<128x128xf32>,
    %c5_i32 = arith.constant 5 : i32
    %59 = arith.cmpi eq, %arg1, %c5_i32 : i32
    %60 = arith.extui %59 : i1 to i32
    %c0_i32_24 = arith.constant 0 : i32
    %61 = arith.cmpi ne, %60, %c0_i32_24 : i32
    scf.if %61 {
      %c0_25 = arith.constant 0 : index
      %c0_26 = arith.constant 0 : index
      %62 = vector.load %arg11[%c0_25, %c0_26] : memref<128x128xf32, #tpu.memory_space<vmem>>, vector<128x128xf32>
      %cst_27 = arith.constant dense<0.000000e+00> : vector<128x128xf32>
      %63 = tpu.matmul %57, %62, %cst_27 {dimension_numbers = #tpu.dot_dimension_numbers<[1], [0], [0], [1], [0, 0, 1, 1], [], []>} : vector<128x128xf32>, vector<128x128xf32>, vector<128x128xf32> -> vector<128x128xf32>
      %c0_28 = arith.constant 0 : index
      %c0_29 = arith.constant 0 : index
      %64 = vector.load %arg12[%c0_28, %c0_29] : memref<1x128xf32, #tpu.memory_space<vmem>>, vector<1x128xf32>
      %65 = vector.broadcast %64 : vector<1x128xf32> to vector<128x128xf32>
      %66 = arith.addf %63, %65 : vector<128x128xf32>
      %c0_30 = arith.constant 0 : index
      %c0_31 = arith.constant 0 : index
      %67 = vector.load %arg13[%c0_30, %c0_31] : memref<128x128xf32, #tpu.memory_space<vmem>>, vector<128x128xf32>
      tpu.vector_store %arg13[%c0_30, %c0_31], %66 {strides = array<i32>} : memref<128x128xf32, #tpu.memory_space<vmem>>, vector<128x128xf32>,
    } else {
    }
    return
  }
  func.func @transform_0(%arg0: i32, %arg1: i32) -> (i32, i32) {
    %c0_i32 = arith.constant 0 : i32
    %c0_i32_0 = arith.constant 0 : i32
    return %arg0, %c0_i32 : i32, i32
  }
  func.func @transform_1(%arg0: i32, %arg1: i32) -> (i32, i32) {
    %c0_i32 = arith.constant 0 : i32
    %c0_i32_0 = arith.constant 0 : i32
    %c0_i32_1 = arith.constant 0 : i32
    return %c0_i32, %c0_i32_0 : i32, i32
  }
  func.func @transform_2(%arg0: i32, %arg1: i32) -> (i32, i32) {
    %c0_i32 = arith.constant 0 : i32
    %c0_i32_0 = arith.constant 0 : i32
    %c0_i32_1 = arith.constant 0 : i32
    return %c0_i32, %c0_i32_0 : i32, i32
  }
  func.func @transform_3(%arg0: i32, %arg1: i32) -> (i32, i32, i32) {
    %c0_i32 = arith.constant 0 : i32
    %c0_i32_0 = arith.constant 0 : i32
    %c0_i32_1 = arith.constant 0 : i32
    %c0_i32_2 = arith.constant 0 : i32
    return %c0_i32, %c0_i32_0, %c0_i32_1 : i32, i32, i32
  }
  func.func @transform_4(%arg0: i32, %arg1: i32) -> (i32, i32, i32) {
    %c0_i32 = arith.constant 0 : i32
    %c0_i32_0 = arith.constant 0 : i32
    %c0_i32_1 = arith.constant 0 : i32
    %c0_i32_2 = arith.constant 0 : i32
    return %c0_i32, %c0_i32_0, %c0_i32_1 : i32, i32, i32
  }
  func.func @transform_5(%arg0: i32, %arg1: i32) -> (i32, i32, i32) {
    %c0_i32 = arith.constant 0 : i32
    %c0_i32_0 = arith.constant 0 : i32
    %c0_i32_1 = arith.constant 0 : i32
    %c0_i32_2 = arith.constant 0 : i32
    return %c0_i32, %c0_i32_0, %c0_i32_1 : i32, i32, i32
  }
  func.func @transform_6(%arg0: i32, %arg1: i32) -> (i32, i32, i32) {
    %c0_i32 = arith.constant 0 : i32
    %c0_i32_0 = arith.constant 0 : i32
    %c0_i32_1 = arith.constant 0 : i32
    %c0_i32_2 = arith.constant 0 : i32
    return %c0_i32, %c0_i32_0, %c0_i32_1 : i32, i32, i32
  }
  func.func @transform_7(%arg0: i32, %arg1: i32) -> (i32, i32, i32) {
    %c0_i32 = arith.constant 0 : i32
    %c0_i32_0 = arith.constant 0 : i32
    %c0_i32_1 = arith.constant 0 : i32
    %c0_i32_2 = arith.constant 0 : i32
    return %c0_i32, %c0_i32_0, %c0_i32_1 : i32, i32, i32
  }
  func.func @transform_8(%arg0: i32, %arg1: i32) -> (i32, i32, i32) {
    %c0_i32 = arith.constant 0 : i32
    %c0_i32_0 = arith.constant 0 : i32
    %c0_i32_1 = arith.constant 0 : i32
    %c0_i32_2 = arith.constant 0 : i32
    return %c0_i32, %c0_i32_0, %c0_i32_1 : i32, i32, i32
  }
  func.func @transform_9(%arg0: i32, %arg1: i32) -> (i32, i32) {
    %c0_i32 = arith.constant 0 : i32
    %c0_i32_0 = arith.constant 0 : i32
    %c0_i32_1 = arith.constant 0 : i32
    return %c0_i32, %c0_i32_0 : i32, i32
  }
  func.func @transform_10(%arg0: i32, %arg1: i32) -> (i32, i32) {
    %c0_i32 = arith.constant 0 : i32
    %c0_i32_0 = arith.constant 0 : i32
    %c0_i32_1 = arith.constant 0 : i32
    return %c0_i32, %c0_i32_0 : i32, i32
  }
  func.func @transform_11(%arg0: i32, %arg1: i32) -> (i32, i32) {
    %c0_i32 = arith.constant 0 : i32
    %c0_i32_0 = arith.constant 0 : i32
    return %arg0, %c0_i32 : i32, i32
  }
}

</mosaic_0001>

<llo_original>
// kernel: tpu_custom_call.1
$region0: #{tpu_custom_call.1}
  #allocation0 [shape = 'u32[]', space=smem, size = 0x4, offset = 0x4, fixed_abs, tag = 'smem constant byte address 0x4 - core index']
  #allocation1 [shape = 'u32[144,128]{1,0:T(1,128)}', space=vmem, size = 0x12000, scoped, tag = 'internal scratch']
  #allocation2 [shape = 'f32[128,128]{1,0:T(8,128)}', space=vmem, size = 0x10000, scoped, tag = 'scratch operand']
  %s0 = inlined_call_operand.hbm [shape: f32[256,128], index: 0, kind: input, shape index: {}]
  %s1 = inlined_call_operand.hbm [shape: f32[128,128], index: 1, kind: input, shape index: {}]
  %s2 = inlined_call_operand.hbm [shape: f32[1,128], index: 2, kind: input, shape index: {}]
  %s3 = inlined_call_operand.vmem [shape: f32[6,1,128], index: 3, kind: input, shape index: {}]
  %s4 = inlined_call_operand.vmem [shape: f32[6,1,128], index: 4, kind: input, shape index: {}]
  %s5 = inlined_call_operand.hbm [shape: f32[6,128,128], index: 5, kind: input, shape index: {}]
  %s6 = inlined_call_operand.vmem [shape: f32[6,1,128], index: 6, kind: input, shape index: {}]
  %s7 = inlined_call_operand.hbm [shape: f32[6,128,128], index: 7, kind: input, shape index: {}]
  %s8 = inlined_call_operand.vmem [shape: f32[6,1,128], index: 8, kind: input, shape index: {}]
  %s9 = inlined_call_operand.hbm [shape: f32[128,128], index: 9, kind: input, shape index: {}]
  %s10 = inlined_call_operand.vmem [shape: f32[1,128], index: 10, kind: input, shape index: {}]
  %s11 = inlined_call_operand.hbm [shape: f32[256,128], index: 11, kind: output, shape index: {}]
  %s12 = sld [smem:[#allocation0]]
  $region109: #{tpu_custom_call.1} parent=0
    _
  %s14 = ssub.s32 1, %s12
  %s15 = scalar_select 0, %s14, %s12
  $region1: #{tpu_custom_call.1} parent=0
    #allocation3 [shape = 'u8[131072]{0}', space=vmem, size = 0x20000, scoped, tag = 'input window, operand 0']
    #allocation4 [shape = 's32[2]{0}', space=sflag, size = 0x8, scoped, tag = 'scoped memory for tpu_custom_call.1']
    #allocation5 [shape = 's32[2]{0}', space=sflag, size = 0x8, scoped, tag = 'scoped memory for tpu_custom_call.1']
    #allocation6 [shape = 'u8[65536]{0}', space=vmem, size = 0x10000, scoped, tag = 'input window, operand 1, single buffered']
    #allocation7 [shape = 's32[1]{0}', space=sflag, size = 0x4, scoped, tag = 'scoped memory for tpu_custom_call.1']
    #allocation8 [shape = 'u8[512]{0}', space=vmem, size = 0x400, scoped, tag = 'input window, operand 2, single buffered']
    #allocation9 [shape = 'u8[393216]{0}', space=vmem, size = 0x60000, scoped, tag = 'input window, operand 5, single buffered']
    #allocation10 [shape = 's32[1]{0}', space=sflag, size = 0x4, scoped, tag = 'scoped memory for tpu_custom_call.1']
    #allocation11 [shape = 'u8[393216]{0}', space=vmem, size = 0x60000, scoped, tag = 'input window, operand 7, single buffered']
    #allocation12 [shape = 'u8[65536]{0}', space=vmem, size = 0x10000, scoped, tag = 'input window, operand 9, single buffered']
    #allocation13 [shape = 's32[1]{0}', space=sflag, size = 0x4, scoped, tag = 'scoped memory for tpu_custom_call.1']
    #allocation14 [shape = 'u8[131072]{0}', space=vmem, size = 0x20000, scoped, tag = 'output window, operand 0']
    %16 = vsyncpa [#allocation4], 0
    %s17 = scalar_lea.sflag [#allocation4], 1
    %18 = vsyncpa %s17, 0
    %19 = vsyncpa [#allocation7], 0
    %20 = vsyncpa [#allocation10], 0
    %21 = vsyncpa [#allocation13], 0
    %22 = vsyncpa [#allocation5], 0
    %s23 = scalar_lea.sflag [#allocation5], 1
    %24 = vsyncpa %s23, 0
    loop: start=0, step=1, limit=14
    $region2: #{tpu_custom_call.1} parent=1 // loop_pre_header
      _
    $region3: #{tpu_custom_call.1} parent=1 // loop_header
      %s26 = sphi 0, %s30
      %p27 = scmp.ge.s32.totalorder %s26, 14
      %s33 = sphi 0, %s45
      %s34 = sphi 0, %s41
      %s35 = sphi 0, %s33
      %s36 = sphi 0, %s34
      %s37 = sphi 0, %s35
      %s38 = sphi 0, %s36
      %s48 = sphi 0, %s50
      %s51 = sphi 0, %s48
      %s52 = sphi 0, %s51
      %s68 = sphi 0, %s52
      %s72 = sphi 0, %s72
      %s74 = sphi 0, %s72
      %s75 = sphi 0, %s74
      %s89 = sphi 0, %s75
      %s93 = sphi 0, %s93
      %s95 = sphi 0, %s93
      %s96 = sphi 0, %s95
      %s110 = sphi 0, %s96
      %s114 = sphi 0, %s114
      %s116 = sphi 0, %s114
      %s117 = sphi 0, %s116
      %s131 = sphi 0, %s117
      %s135 = sphi 0, %s135
      %s137 = sphi 0, %s135
      %s138 = sphi 0, %s137
      %s152 = sphi 0, %s138
      %s156 = sphi 0, %s156
      %s158 = sphi 0, %s156
      %s159 = sphi 0, %s158
      %s173 = sphi 0, %s159
      %s177 = sphi 0, %s177
      %s179 = sphi 0, %s177
      %s180 = sphi 0, %s179
      %s194 = sphi 0, %s180
      %s198 = sphi 0, %s198
      %s200 = sphi 0, %s198
      %s201 = sphi 0, %s200
      %s215 = sphi 0, %s201
      %s219 = sphi 0, %s219
      %s221 = sphi 0, %s219
      %s222 = sphi 0, %s221
      %s236 = sphi 0, %s222
      %s240 = sphi 0, %s240
      %s242 = sphi 0, %s240
      %s243 = sphi 0, %s242
      %s257 = sphi 0, %s243
      %s261 = sphi 0, %s261
      %s263 = sphi 0, %s261
      %s264 = sphi 0, %s263
      %s278 = sphi 0, %s264
      %s284 = sphi 0, %s286
      %s287 = sphi 0, %s284
      %s288 = sphi 0, %s287
      %s304 = sphi 0, %s288
    $region4: #{tpu_custom_call.1} parent=1 // loop_header_branch
      %29 = sbr.rel (%p27) target = $region8
    $region5: #{tpu_custom_call.1} parent=1 // loop_body
      %s31 = ssub.s32 %s26, 1
      %s32 = ssub.s32 %s26, 2
      %s39 = sadd.s32 1, %s34
      %p40 = scmp.ge.s32.totalorder %s39, 6
      %s41 = scalar_select %p40, 0, %s39
      %s42 = sadd.s32 1, %s33
      %s43 = scalar_select %p40, %s42, %s33
      %p44 = scmp.ge.s32.totalorder %s43, 2
      %s45 = scalar_select %p44, 0, %s43
      %s46 = ssub.s32 %s33, %s45
      %p47 = scmp.eq.s32.totalorder %s46, 0
      %s49 = sadd.s32 %s48, 1
      %s50 = scalar_select %p47, %s48, %s49
      %p53 = pneg %p47
      %p54 = scmp.eq.s32.totalorder %s26, 11
      %p55 = por %p53, %p54
      %p56 = scmp.ne.s32.totalorder %s48, %s51
      %p57 = scmp.eq.s32.totalorder %s26, 0
      %p58 = por %p56, %p57
      %p59 = scmp.ne.s32.totalorder %s48, %s51
      %p60 = scmp.eq.s32.totalorder %s31, 11
      %p61 = por %p59, %p60
      %p62 = scmp.ne.s32.totalorder %s51, %s52
      %p63 = scmp.eq.s32.totalorder %s31, 0
      %p64 = por %p62, %p63
      %p65 = scmp.ne.s32.totalorder %s51, %s52
      %p66 = scmp.eq.s32.totalorder %s32, 11
      %p67 = por %p65, %p66
      %p69 = scmp.ne.s32.totalorder %s52, %s68
      %p70 = scmp.eq.s32.totalorder %s32, 0
      %p71 = por %p69, %p70
      %s73 = sadd.s32 %s72, 1
      %p76 = scmp.eq.s32.totalorder %s26, 11
      %p77 = scmp.ne.s32.totalorder %s72, %s74
      %p78 = scmp.eq.s32.totalorder %s26, 0
      %p79 = por %p77, %p78
      %p80 = scmp.ne.s32.totalorder %s72, %s74
      %p81 = scmp.eq.s32.totalorder %s31, 11
      %p82 = por %p80, %p81
      %p83 = scmp.ne.s32.totalorder %s74, %s75
      %p84 = scmp.eq.s32.totalorder %s31, 0
      %p85 = por %p83, %p84
      %p86 = scmp.ne.s32.totalorder %s74, %s75
      %p87 = scmp.eq.s32.totalorder %s32, 11
      %p88 = por %p86, %p87
      %p90 = scmp.ne.s32.totalorder %s75, %s89
      %p91 = scmp.eq.s32.totalorder %s32, 0
      %p92 = por %p90, %p91
      %s94 = sadd.s32 %s93, 1
      %p97 = scmp.eq.s32.totalorder %s26, 11
      %p98 = scmp.ne.s32.totalorder %s93, %s95
      %p99 = scmp.eq.s32.totalorder %s26, 0
      %p100 = por %p98, %p99
      %p101 = scmp.ne.s32.totalorder %s93, %s95
      %p102 = scmp.eq.s32.totalorder %s31, 11
      %p103 = por %p101, %p102
      %p104 = scmp.ne.s32.totalorder %s95, %s96
      %p105 = scmp.eq.s32.totalorder %s31, 0
      %p106 = por %p104, %p105
      %p107 = scmp.ne.s32.totalorder %s95, %s96
      %p108 = scmp.eq.s32.totalorder %s32, 11
      %p109 = por %p107, %p108
      %p111 = scmp.ne.s32.totalorder %s96, %s110
      %p112 = scmp.eq.s32.totalorder %s32, 0
      %p113 = por %p111, %p112
      %s115 = sadd.s32 %s114, 1
      %p118 = scmp.eq.s32.totalorder %s26, 11
      %p119 = scmp.ne.s32.totalorder %s114, %s116
      %p120 = scmp.eq.s32.totalorder %s26, 0
      %p121 = por %p119, %p120
      %p122 = scmp.ne.s32.totalorder %s114, %s116
      %p123 = scmp.eq.s32.totalorder %s31, 11
      %p124 = por %p122, %p123
      %p125 = scmp.ne.s32.totalorder %s116, %s117
      %p126 = scmp.eq.s32.totalorder %s31, 0
      %p127 = por %p125, %p126
      %p128 = scmp.ne.s32.totalorder %s116, %s117
      %p129 = scmp.eq.s32.totalorder %s32, 11
      %p130 = por %p128, %p129
      %p132 = scmp.ne.s32.totalorder %s117, %s131
      %p133 = scmp.eq.s32.totalorder %s32, 0
      %p134 = por %p132, %p133
      %s136 = sadd.s32 %s135, 1
      %p139 = scmp.eq.s32.totalorder %s26, 11
      %p140 = scmp.ne.s32.totalorder %s135, %s137
      %p141 = scmp.eq.s32.totalorder %s26, 0
      %p142 = por %p140, %p141
      %p143 = scmp.ne.s32.totalorder %s135, %s137
      %p144 = scmp.eq.s32.totalorder %s31, 11
      %p145 = por %p143, %p144
      %p146 = scmp.ne.s32.totalorder %s137, %s138
      %p147 = scmp.eq.s32.totalorder %s31, 0
      %p148 = por %p146, %p147
      %p149 = scmp.ne.s32.totalorder %s137, %s138
      %p150 = scmp.eq.s32.totalorder %s32, 11
      %p151 = por %p149, %p150
      %p153 = scmp.ne.s32.totalorder %s138, %s152
      %p154 = scmp.eq.s32.totalorder %s32, 0
      %p155 = por %p153, %p154
      %s157 = sadd.s32 %s156, 1
      %p160 = scmp.eq.s32.totalorder %s26, 11
      %p161 = scmp.ne.s32.totalorder %s156, %s158
      %p162 = scmp.eq.s32.totalorder %s26, 0
      %p163 = por %p161, %p162
      %p164 = scmp.ne.s32.totalorder %s156, %s158
      %p165 = scmp.eq.s32.totalorder %s31, 11
      %p166 = por %p164, %p165
      %p167 = scmp.ne.s32.totalorder %s158, %s159
      %p168 = scmp.eq.s32.totalorder %s31, 0
      %p169 = por %p167, %p168
      %p170 = scmp.ne.s32.totalorder %s158, %s159
      %p171 = scmp.eq.s32.totalorder %s32, 11
      %p172 = por %p170, %p171
      %p174 = scmp.ne.s32.totalorder %s159, %s173
      %p175 = scmp.eq.s32.totalorder %s32, 0
      %p176 = por %p174, %p175
      %s178 = sadd.s32 %s177, 1
      %p181 = scmp.eq.s32.totalorder %s26, 11
      %p182 = scmp.ne.s32.totalorder %s177, %s179
      %p183 = scmp.eq.s32.totalorder %s26, 0
      %p184 = por %p182, %p183
      %p185 = scmp.ne.s32.totalorder %s177, %s179
      %p186 = scmp.eq.s32.totalorder %s31, 11
      %p187 = por %p185, %p186
      %p188 = scmp.ne.s32.totalorder %s179, %s180
      %p189 = scmp.eq.s32.totalorder %s31, 0
      %p190 = por %p188, %p189
      %p191 = scmp.ne.s32.totalorder %s179, %s180
      %p192 = scmp.eq.s32.totalorder %s32, 11
      %p193 = por %p191, %p192
      %p195 = scmp.ne.s32.totalorder %s180, %s194
      %p196 = scmp.eq.s32.totalorder %s32, 0
      %p197 = por %p195, %p196
      %s199 = sadd.s32 %s198, 1
      %p202 = scmp.eq.s32.totalorder %s26, 11
      %p203 = scmp.ne.s32.totalorder %s198, %s200
      %p204 = scmp.eq.s32.totalorder %s26, 0
      %p205 = por %p203, %p204
      %p206 = scmp.ne.s32.totalorder %s198, %s200
      %p207 = scmp.eq.s32.totalorder %s31, 11
      %p208 = por %p206, %p207
      %p209 = scmp.ne.s32.totalorder %s200, %s201
      %p210 = scmp.eq.s32.totalorder %s31, 0
      %p211 = por %p209, %p210
      %p212 = scmp.ne.s32.totalorder %s200, %s201
      %p213 = scmp.eq.s32.totalorder %s32, 11
      %p214 = por %p212, %p213
      %p216 = scmp.ne.s32.totalorder %s201, %s215
      %p217 = scmp.eq.s32.totalorder %s32, 0
      %p218 = por %p216, %p217
      %s220 = sadd.s32 %s219, 1
      %p223 = scmp.eq.s32.totalorder %s26, 11
      %p224 = scmp.ne.s32.totalorder %s219, %s221
      %p225 = scmp.eq.s32.totalorder %s26, 0
      %p226 = por %p224, %p225
      %p227 = scmp.ne.s32.totalorder %s219, %s221
      %p228 = scmp.eq.s32.totalorder %s31, 11
      %p229 = por %p227, %p228
      %p230 = scmp.ne.s32.totalorder %s221, %s222
      %p231 = scmp.eq.s32.totalorder %s31, 0
      %p232 = por %p230, %p231
      %p233 = scmp.ne.s32.totalorder %s221, %s222
      %p234 = scmp.eq.s32.totalorder %s32, 11
      %p235 = por %p233, %p234
      %p237 = scmp.ne.s32.totalorder %s222, %s236
      %p238 = scmp.eq.s32.totalorder %s32, 0
      %p239 = por %p237, %p238
      %s241 = sadd.s32 %s240, 1
      %p244 = scmp.eq.s32.totalorder %s26, 11
      %p245 = scmp.ne.s32.totalorder %s240, %s242
      %p246 = scmp.eq.s32.totalorder %s26, 0
      %p247 = por %p245, %p246
      %p248 = scmp.ne.s32.totalorder %s240, %s242
      %p249 = scmp.eq.s32.totalorder %s31, 11
      %p250 = por %p248, %p249
      %p251 = scmp.ne.s32.totalorder %s242, %s243
      %p252 = scmp.eq.s32.totalorder %s31, 0
      %p253 = por %p251, %p252
      %p254 = scmp.ne.s32.totalorder %s242, %s243
      %p255 = scmp.eq.s32.totalorder %s32, 11
      %p256 = por %p254, %p255
      %p258 = scmp.ne.s32.totalorder %s243, %s257
      %p259 = scmp.eq.s32.totalorder %s32, 0
      %p260 = por %p258, %p259
      %s262 = sadd.s32 %s261, 1
      %p265 = scmp.eq.s32.totalorder %s26, 11
      %p266 = scmp.ne.s32.totalorder %s261, %s263
      %p267 = scmp.eq.s32.totalorder %s26, 0
      %p268 = por %p266, %p267
      %p269 = scmp.ne.s32.totalorder %s261, %s263
      %p270 = scmp.eq.s32.totalorder %s31, 11
      %p271 = por %p269, %p270
      %p272 = scmp.ne.s32.totalorder %s263, %s264
      %p273 = scmp.eq.s32.totalorder %s31, 0
      %p274 = por %p272, %p273
      %p275 = scmp.ne.s32.totalorder %s263, %s264
      %p276 = scmp.eq.s32.totalorder %s32, 11
      %p277 = por %p275, %p276
      %p279 = scmp.ne.s32.totalorder %s264, %s278
      %p280 = scmp.eq.s32.totalorder %s32, 0
      %p281 = por %p279, %p280
      %s282 = ssub.s32 %s33, %s45
      %p283 = scmp.eq.s32.totalorder %s282, 0
      %s285 = sadd.s32 %s284, 1
      %s286 = scalar_select %p283, %s284, %s285
      %p289 = pneg %p283
      %p290 = scmp.eq.s32.totalorder %s26, 11
      %p291 = por %p289, %p290
      %p292 = scmp.ne.s32.totalorder %s284, %s287
      %p293 = scmp.eq.s32.totalorder %s26, 0
      %p294 = por %p292, %p293
      %p295 = scmp.ne.s32.totalorder %s284, %s287
      %p296 = scmp.eq.s32.totalorder %s31, 11
      %p297 = por %p295, %p296
      %p298 = scmp.ne.s32.totalorder %s287, %s288
      %p299 = scmp.eq.s32.totalorder %s31, 0
      %p300 = por %p298, %p299
      %p301 = scmp.ne.s32.totalorder %s287, %s288
      %p302 = scmp.eq.s32.totalorder %s32, 11
      %p303 = por %p301, %p302
      %p305 = scmp.ne.s32.totalorder %s288, %s304
      %p306 = scmp.eq.s32.totalorder %s32, 0
      %p307 = por %p305, %p306
      %p308 = scmp.le.s32.totalorder 1, %s26
      %p309 = scmp.lt.s32.totalorder %s26, 13
      %p310 = pnand %p308, %p309
      %p311 = pneg %p310
      // Predicated region
      $region9: #{tpu_custom_call.1} parent=5 // pred_check
        _
      $region10: #{tpu_custom_call.1} parent=5 // pred_check_branch
        %313 = sbr.rel (%p310) target = $region12
      $region11: #{tpu_custom_call.1} parent=5 // pred_region
        %s314 = ssub.s32 %s26, 1
        // Predicated region
        $region13: #{tpu_custom_call.1} parent=11 // pred_check
          %p315 = pneg %p85
        $region14: #{tpu_custom_call.1} parent=11 // pred_check_branch
          %317 = sbr.rel (%p315) target = $region16
        $region15: #{tpu_custom_call.1} parent=11 // pred_region
          %s319 = ssub.s32 2048, 2048
          %320 = vsyncadd [#allocation7], %s319
          %s321 = sshll.u32 [#allocation6], 4
          %s322 = int_to_ptr.vmem [resolvable:$true] %s321
          %327 = dma.hbm_to_vmem [thread:$0]  %s1, 2048, %s322, [#allocation7], 128, 128, 8
        $region16: #{tpu_custom_call.1} parent=11 // pred_fallthru
          _
        // Predicated region
        $region17: #{tpu_custom_call.1} parent=11 // pred_check
          %p328 = pneg %p106
        $region18: #{tpu_custom_call.1} parent=11 // pred_check_branch
          %330 = sbr.rel (%p328) target = $region20
        $region19: #{tpu_custom_call.1} parent=11 // pred_region
          %s332 = ssub.s32 16, 16
          %333 = vsyncadd [#allocation7], %s332
          %s335 = sshll.u32 [#allocation8], 4
          %s336 = int_to_ptr.vmem [resolvable:$true] %s335
          %338 = dma.hbm_to_vmem [thread:$0]  %s2, 16, %s336, [#allocation7]
        $region20: #{tpu_custom_call.1} parent=11 // pred_fallthru
          _
        // Predicated region
        $region21: #{tpu_custom_call.1} parent=11 // pred_check
          %p339 = pneg %p127
        $region22: #{tpu_custom_call.1} parent=11 // pred_check_branch
          %341 = sbr.rel (%p339) target = $region24
        $region23: #{tpu_custom_call.1} parent=11 // pred_region
          _
        $region24: #{tpu_custom_call.1} parent=11 // pred_fallthru
          _
        // Predicated region
        $region25: #{tpu_custom_call.1} parent=11 // pred_check
          %p342 = pneg %p148
        $region26: #{tpu_custom_call.1} parent=11 // pred_check_branch
          %344 = sbr.rel (%p342) target = $region28
        $region27: #{tpu_custom_call.1} parent=11 // pred_region
          _
        $region28: #{tpu_custom_call.1} parent=11 // pred_fallthru
          _
        // Predicated region
        $region29: #{tpu_custom_call.1} parent=11 // pred_check
          %p345 = pneg %p169
        $region30: #{tpu_custom_call.1} parent=11 // pred_check_branch
          %347 = sbr.rel (%p345) target = $region32
        $region31: #{tpu_custom_call.1} parent=11 // pred_region
          %s349 = ssub.s32 12288, 12288
          %350 = vsyncadd [#allocation10], %s349
          %s351 = sshll.u32 [#allocation9], 4
          %s352 = int_to_ptr.vmem [resolvable:$true] %s351
          %357 = dma.hbm_to_vmem [thread:$0]  %s5, 12288, %s352, [#allocation10], 128, 128, 8
        $region32: #{tpu_custom_call.1} parent=11 // pred_fallthru
          _
        // Predicated region
        $region33: #{tpu_custom_call.1} parent=11 // pred_check
          %p358 = pneg %p190
        $region34: #{tpu_custom_call.1} parent=11 // pred_check_branch
          %360 = sbr.rel (%p358) target = $region36
        $region35: #{tpu_custom_call.1} parent=11 // pred_region
          _
        $region36: #{tpu_custom_call.1} parent=11 // pred_fallthru
          _
        // Predicated region
        $region37: #{tpu_custom_call.1} parent=11 // pred_check
          %p361 = pneg %p211
        $region38: #{tpu_custom_call.1} parent=11 // pred_check_branch
          %363 = sbr.rel (%p361) target = $region40
        $region39: #{tpu_custom_call.1} parent=11 // pred_region
          %s365 = ssub.s32 12288, 12288
          %366 = vsyncadd [#allocation10], %s365
          %s367 = sshll.u32 [#allocation11], 4
          %s368 = int_to_ptr.vmem [resolvable:$true] %s367
          %373 = dma.hbm_to_vmem [thread:$0]  %s7, 12288, %s368, [#allocation10], 128, 128, 8
        $region40: #{tpu_custom_call.1} parent=11 // pred_fallthru
          _
        // Predicated region
        $region41: #{tpu_custom_call.1} parent=11 // pred_check
          %p374 = pneg %p232
        $region42: #{tpu_custom_call.1} parent=11 // pred_check_branch
          %376 = sbr.rel (%p374) target = $region44
        $region43: #{tpu_custom_call.1} parent=11 // pred_region
          _
        $region44: #{tpu_custom_call.1} parent=11 // pred_fallthru
          _
        // Predicated region
        $region45: #{tpu_custom_call.1} parent=11 // pred_check
          %p377 = pneg %p253
        $region46: #{tpu_custom_call.1} parent=11 // pred_check_branch
          %379 = sbr.rel (%p377) target = $region48
        $region47: #{tpu_custom_call.1} parent=11 // pred_region
          %s381 = ssub.s32 2048, 2048
          %382 = vsyncadd [#allocation13], %s381
          %s383 = sshll.u32 [#allocation12], 4
          %s384 = int_to_ptr.vmem [resolvable:$true] %s383
          %389 = dma.hbm_to_vmem [thread:$0]  %s9, 2048, %s384, [#allocation13], 128, 128, 8
        $region48: #{tpu_custom_call.1} parent=11 // pred_fallthru
          _
        // Predicated region
        $region49: #{tpu_custom_call.1} parent=11 // pred_check
          %p390 = pneg %p274
        $region50: #{tpu_custom_call.1} parent=11 // pred_check_branch
          %392 = sbr.rel (%p390) target = $region52
        $region51: #{tpu_custom_call.1} parent=11 // pred_region
          _
        $region52: #{tpu_custom_call.1} parent=11 // pred_fallthru
          _
      $region12: #{tpu_custom_call.1} parent=5 // pred_fallthru
        _
      %p393 = scmp.lt.s32.totalorder %s26, 12
      // Predicated region
      $region53: #{tpu_custom_call.1} parent=5 // pred_check
        %p394 = pneg %p393
      $region54: #{tpu_custom_call.1} parent=5 // pred_check_branch
        %396 = sbr.rel (%p394) target = $region56
      $region55: #{tpu_custom_call.1} parent=5 // pred_region
        // Predicated region
        $region57: #{tpu_custom_call.1} parent=55 // pred_check
          %p397 = pneg %p58
        $region58: #{tpu_custom_call.1} parent=55 // pred_check_branch
          %399 = sbr.rel (%p397) target = $region60
        $region59: #{tpu_custom_call.1} parent=55 // pred_region
          %s400 = sand.u32 %s48, 1
          %s401 = scalar_lea.sflag [#allocation4], %s400
          %s402 = sand.u32 %s48, 1
          %s403 = smul.addr %s402, 128
          %s404 = scalar_lea.vmem [#allocation3], %s403
          %s405 = smul.u32 16, %s33
          %s407 = ssub.s32 2048, 2048
          %408 = vsyncadd %s401, %s407
          %s409 = smul.addr %s405, 128
          %s410 = scalar_lea.hbm %s0, %s409
          %s411 = sshll.u32 %s404, 4
          %s412 = int_to_ptr.vmem [resolvable:$true] %s411
          %417 = dma.hbm_to_vmem [thread:$0]  %s410, 2048, %s412, %s401, 128, 128, 8
        $region60: #{tpu_custom_call.1} parent=55 // pred_fallthru
          _
      $region56: #{tpu_custom_call.1} parent=5 // pred_fallthru
        _
      %p418 = scmp.le.s32.totalorder 1, %s26
      %p419 = scmp.lt.s32.totalorder %s26, 13
      %p420 = pnand %p418, %p419
      %p421 = pneg %p420
      // Predicated region
      $region61: #{tpu_custom_call.1} parent=5 // pred_check
        _
      $region62: #{tpu_custom_call.1} parent=5 // pred_check_branch
        %423 = sbr.rel (%p420) target = $region64
      $region63: #{tpu_custom_call.1} parent=5 // pred_region
        %s424 = ssub.s32 %s26, 1
        %s425 = sand.u32 %s51, 1
        %s426 = scalar_lea.sflag [#allocation4], %s425
        %s427 = sand.u32 %s51, 1
        %s428 = smul.addr %s427, 128
        %s429 = scalar_lea.vmem [#allocation3], %s428
        // Predicated region
        $region65: #{tpu_custom_call.1} parent=63 // pred_check
          %p430 = pneg %p64
        $region66: #{tpu_custom_call.1} parent=63 // pred_check_branch
          %432 = sbr.rel (%p430) target = $region68
        $region67: #{tpu_custom_call.1} parent=63 // pred_region
          %433 = dma.done %s426, 2048
        $region68: #{tpu_custom_call.1} parent=63 // pred_fallthru
          _
        // Predicated region
        $region69: #{tpu_custom_call.1} parent=63 // pred_check
          %p434 = pneg %p85
        $region70: #{tpu_custom_call.1} parent=63 // pred_check_branch
          %436 = sbr.rel (%p434) target = $region72
        $region71: #{tpu_custom_call.1} parent=63 // pred_region
          %437 = dma.done [#allocation7], 2048
        $region72: #{tpu_custom_call.1} parent=63 // pred_fallthru
          _
        // Predicated region
        $region73: #{tpu_custom_call.1} parent=63 // pred_check
          %p438 = pneg %p106
        $region74: #{tpu_custom_call.1} parent=63 // pred_check_branch
          %440 = sbr.rel (%p438) target = $region76
        $region75: #{tpu_custom_call.1} parent=63 // pred_region
          %441 = dma.done [#allocation7], 16
        $region76: #{tpu_custom_call.1} parent=63 // pred_fallthru
          _
        // Predicated region
        $region77: #{tpu_custom_call.1} parent=63 // pred_check
          %p442 = pneg %p169
        $region78: #{tpu_custom_call.1} parent=63 // pred_check_branch
          %444 = sbr.rel (%p442) target = $region80
        $region79: #{tpu_custom_call.1} parent=63 // pred_region
          %445 = dma.done [#allocation10], 12288
        $region80: #{tpu_custom_call.1} parent=63 // pred_fallthru
          _
        // Predicated region
        $region81: #{tpu_custom_call.1} parent=63 // pred_check
          %p446 = pneg %p211
        $region82: #{tpu_custom_call.1} parent=63 // pred_check_branch
          %448 = sbr.rel (%p446) target = $region84
        $region83: #{tpu_custom_call.1} parent=63 // pred_region
          %449 = dma.done [#allocation10], 12288
        $region84: #{tpu_custom_call.1} parent=63 // pred_fallthru
          _
        // Predicated region
        $region85: #{tpu_custom_call.1} parent=63 // pred_check
          %p450 = pneg %p253
        $region86: #{tpu_custom_call.1} parent=63 // pred_check_branch
          %452 = sbr.rel (%p450) target = $region88
        $region87: #{tpu_custom_call.1} parent=63 // pred_region
          %453 = dma.done [#allocation13], 2048
        $region88: #{tpu_custom_call.1} parent=63 // pred_fallthru
          _
        %s454 = sand.u32 %s51, 1
        %s455 = scalar_lea.sflag [#allocation4], %s454
        %s456 = sand.u32 %s51, 1
        %s457 = smul.addr %s456, 128
        %s458 = scalar_lea.vmem [#allocation3], %s457
        %p459 = pneg %p64
        %p460 = pneg %p61
        %p461 = pneg %p85
        %p462 = pneg %p82
        %p463 = pneg %p106
        %p464 = pneg %p103
        %p465 = pneg %p127
        %p466 = pneg %p124
        %p467 = pneg %p148
        %p468 = pneg %p145
        %p469 = pneg %p169
        %p470 = pneg %p166
        %p471 = pneg %p190
        %p472 = pneg %p187
        %p473 = pneg %p211
        %p474 = pneg %p208
        %p475 = pneg %p232
        %p476 = pneg %p229
        %p477 = pneg %p253
        %p478 = pneg %p250
        %p479 = pneg %p274
        %p480 = pneg %p271
        %p481 = pneg %p300
        %p482 = pneg %p297
        %s483 = sand.u32 %s287, 1
        %s484 = scalar_lea.sflag [#allocation5], %s483
        %s485 = sand.u32 %s287, 1
        %s486 = smul.addr %s485, 128
        %s487 = scalar_lea.vmem [#allocation14], %s486
        %s488 = smul.u32 16, %s35
        %s489 = smul.u32 16, %s35
        %p490 = scmp.eq.s32.totalorder %s36, 0
        // Predicated region
        $region89: #{tpu_custom_call.1} parent=63 // pred_check
          %p491 = pneg %p490
        $region90: #{tpu_custom_call.1} parent=63 // pred_check_branch
          %493 = sbr.rel (%p491) target = $region92
        $region91: #{tpu_custom_call.1} parent=63 // pred_region
          %v494 = vld [vmem:[%s429] sm:$0xff]
          %v495 = vld [vmem:[%s429 + $0x8] sm:$0xff]
          %v496 = vld [vmem:[%s429 + $0x10] sm:$0xff]
          %v497 = vld [vmem:[%s429 + $0x18] sm:$0xff]
          %v498 = vld [vmem:[%s429 + $0x20] sm:$0xff]
          %v499 = vld [vmem:[%s429 + $0x28] sm:$0xff]
          %v500 = vld [vmem:[%s429 + $0x30] sm:$0xff]
          %v501 = vld [vmem:[%s429 + $0x38] sm:$0xff]
          %v502 = vld [vmem:[%s429 + $0x40] sm:$0xff]
          %v503 = vld [vmem:[%s429 + $0x48] sm:$0xff]
          %v504 = vld [vmem:[%s429 + $0x50] sm:$0xff]
          %v505 = vld [vmem:[%s429 + $0x58] sm:$0xff]
          %v506 = vld [vmem:[%s429 + $0x60] sm:$0xff]
          %v507 = vld [vmem:[%s429 + $0x68] sm:$0xff]
          %v508 = vld [vmem:[%s429 + $0x70] sm:$0xff]
          %v509 = vld [vmem:[%s429 + $0x78] sm:$0xff]
          %v510 = vld [vmem:[#allocation6] sm:$0xff]
          %v511 = vld [vmem:[#allocation6 + $0x8] sm:$0xff]
          %v512 = vld [vmem:[#allocation6 + $0x10] sm:$0xff]
          %v513 = vld [vmem:[#allocation6 + $0x18] sm:$0xff]
          %v514 = vld [vmem:[#allocation6 + $0x20] sm:$0xff]
          %v515 = vld [vmem:[#allocation6 + $0x28] sm:$0xff]
          %v516 = vld [vmem:[#allocation6 + $0x30] sm:$0xff]
          %v517 = vld [vmem:[#allocation6 + $0x38] sm:$0xff]
          %v518 = vld [vmem:[#allocation6 + $0x40] sm:$0xff]
          %v519 = vld [vmem:[#allocation6 + $0x48] sm:$0xff]
          %v520 = vld [vmem:[#allocation6 + $0x50] sm:$0xff]
          %v521 = vld [vmem:[#allocation6 + $0x58] sm:$0xff]
          %v522 = vld [vmem:[#allocation6 + $0x60] sm:$0xff]
          %v523 = vld [vmem:[#allocation6 + $0x68] sm:$0xff]
          %v524 = vld [vmem:[#allocation6 + $0x70] sm:$0xff]
          %v525 = vld [vmem:[#allocation6 + $0x78] sm:$0xff]
          %v526 = vld [vmem:[#allocation8] sm:$0x1]
          %v528 = vlaneseq
          %v529 = vshrl.u32 %v528, 7
          %v530 = vsub.s32 0, %v529
          %v531 = vrot.slane %v526, %v530
          %533 = vmatprep.subr.mxu0 0.0
          %534 = vmatpush1.msra.mxu0 %v510
          %535 = vmatprep.subr.mxu0 0.0
          %536 = vmatpush1.msra.mxu0 %v511
          %537 = vmatprep.subr.mxu0 0.0
          %538 = vmatpush1.msra.mxu0 %v512
          %539 = vmatprep.subr.mxu0 0.0
          %540 = vmatpush1.msra.mxu0 %v513
          %541 = vmatprep.subr.mxu0 0.0
          %542 = vmatpush1.msra.mxu0 %v514
          %543 = vmatprep.subr.mxu0 0.0
          %544 = vmatpush1.msra.mxu0 %v515
          %545 = vmatprep.subr.mxu0 0.0
          %546 = vmatpush1.msra.mxu0 %v516
          %547 = vmatprep.subr.mxu0 0.0
          %548 = vmatpush1.msra.mxu0 %v517
          %549 = vmatprep.subr.mxu0 0.0
          %550 = vmatpush1.msra.mxu0 %v518
          %551 = vmatprep.subr.mxu0 0.0
          %552 = vmatpush1.msra.mxu0 %v519
          %553 = vmatprep.subr.mxu0 0.0
          %554 = vmatpush1.msra.mxu0 %v520
          %555 = vmatprep.subr.mxu0 0.0
          %556 = vmatpush1.msra.mxu0 %v521
          %557 = vmatprep.subr.mxu0 0.0
          %558 = vmatpush1.msra.mxu0 %v522
          %559 = vmatprep.subr.mxu0 0.0
          %560 = vmatpush1.msra.mxu0 %v523
          %561 = vmatprep.subr.mxu0 0.0
          %562 = vmatpush1.msra.mxu0 %v524
          %563 = vmatprep.subr.mxu0 0.0
          %564 = vmatpush1.msra.mxu0 %v525
          %565 = vmatprep.subr.mxu0 0.0
          %566 = vmatpush1.msra.mxu0 0.0
          %567 = vmatprep.subr.mxu0 0.0
          %568 = vmatpush1.msra.mxu0 0.0
          %569 = vmatprep.subr.mxu0 0.0
          %570 = vmatpush1.msra.mxu0 0.0
          %571 = vmatprep.subr.mxu0 0.0
          %572 = vmatpush1.msra.mxu0 0.0
          %573 = vmatprep.subr.mxu0 0.0
          %574 = vmatpush1.msra.mxu0 0.0
          %575 = vmatprep.subr.mxu0 0.0
          %576 = vmatpush1.msra.mxu0 0.0
          %577 = vmatprep.subr.mxu0 0.0
          %578 = vmatpush1.msra.mxu0 0.0
          %579 = vmatprep.subr.mxu0 0.0
          %580 = vmatpush1.msra.mxu0 0.0
          %581 = vmatprep.subr.mxu0 0.0
          %582 = vmatpush1.msra.mxu0 0.0
          %583 = vmatprep.subr.mxu0 0.0
          %584 = vmatpush1.msra.mxu0 0.0
          %585 = vmatprep.subr.mxu0 0.0
          %586 = vmatpush1.msra.mxu0 0.0
          %587 = vmatprep.subr.mxu0 0.0
          %588 = vmatpush1.msra.mxu0 0.0
          %589 = vmatprep.subr.mxu0 0.0
          %590 = vmatpush1.msra.mxu0 0.0
          %591 = vmatprep.subr.mxu0 0.0
          %592 = vmatpush1.msra.mxu0 0.0
          %593 = vmatprep.subr.mxu0 0.0
          %594 = vmatpush1.msra.mxu0 0.0
          %595 = vmatprep.subr.mxu0 0.0
          %596 = vmatpush1.msra.mxu0 0.0
          %597 = vmatprep.mubr.f32.mxu0 0.0
          %598 = vmatmul.mubr.f32.gmra.mrb[0].mxu0 %v494
          %v599 = vpop.f32.mrb[0].mxu0
          %v600 = vadd.f32 %v531, %v599
          %v601 = vpop.f32.mrb[0].mxu0
          %602 = vmatprep.mubr.f32.mxu0 0.0
          %603 = vmatmul.mubr.f32.gmra.mrb[0].mxu0 %v495
          %v604 = vpop.f32.mrb[0].mxu0
          %v605 = vadd.f32 %v531, %v604
          %v606 = vpop.f32.mrb[0].mxu0
          %607 = vmatprep.mubr.f32.mxu0 0.0
          %608 = vmatmul.mubr.f32.gmra.mrb[0].mxu0 %v496
          %v609 = vpop.f32.mrb[0].mxu0
          %v610 = vadd.f32 %v531, %v609
          %v611 = vpop.f32.mrb[0].mxu0
          %612 = vmatprep.mubr.f32.mxu0 0.0
          %613 = vmatmul.mubr.f32.gmra.mrb[0].mxu0 %v497
          %v614 = vpop.f32.mrb[0].mxu0
          %v615 = vadd.f32 %v531, %v614
          %v616 = vpop.f32.mrb[0].mxu0
          %617 = vmatprep.mubr.f32.mxu0 0.0
          %618 = vmatmul.mubr.f32.gmra.mrb[0].mxu0 %v498
          %v619 = vpop.f32.mrb[0].mxu0
          %v620 = vadd.f32 %v531, %v619
          %v621 = vpop.f32.mrb[0].mxu0
          %622 = vmatprep.mubr.f32.mxu0 0.0
          %623 = vmatmul.mubr.f32.gmra.mrb[0].mxu0 %v499
          %v624 = vpop.f32.mrb[0].mxu0
          %v625 = vadd.f32 %v531, %v624
          %v626 = vpop.f32.mrb[0].mxu0
          %627 = vmatprep.mubr.f32.mxu0 0.0
          %628 = vmatmul.mubr.f32.gmra.mrb[0].mxu0 %v500
          %v629 = vpop.f32.mrb[0].mxu0
          %v630 = vadd.f32 %v531, %v629
          %v631 = vpop.f32.mrb[0].mxu0
          %632 = vmatprep.mubr.f32.mxu0 0.0
          %633 = vmatmul.mubr.f32.gmra.mrb[0].mxu0 %v501
          %v634 = vpop.f32.mrb[0].mxu0
          %v635 = vadd.f32 %v531, %v634
          %v636 = vpop.f32.mrb[0].mxu0
          %637 = vmatprep.mubr.f32.mxu0 0.0
          %638 = vmatmul.mubr.f32.gmra.mrb[0].mxu0 %v502
          %v639 = vpop.f32.mrb[0].mxu0
          %v640 = vadd.f32 %v531, %v639
          %v641 = vpop.f32.mrb[0].mxu0
          %642 = vmatprep.mubr.f32.mxu0 0.0
          %643 = vmatmul.mubr.f32.gmra.mrb[0].mxu0 %v503
          %v644 = vpop.f32.mrb[0].mxu0
          %v645 = vadd.f32 %v531, %v644
          %v646 = vpop.f32.mrb[0].mxu0
          %647 = vmatprep.mubr.f32.mxu0 0.0
          %648 = vmatmul.mubr.f32.gmra.mrb[0].mxu0 %v504
          %v649 = vpop.f32.mrb[0].mxu0
          %v650 = vadd.f32 %v531, %v649
          %v651 = vpop.f32.mrb[0].mxu0
          %652 = vmatprep.mubr.f32.mxu0 0.0
          %653 = vmatmul.mubr.f32.gmra.mrb[0].mxu0 %v505
          %v654 = vpop.f32.mrb[0].mxu0
          %v655 = vadd.f32 %v531, %v654
          %v656 = vpop.f32.mrb[0].mxu0
          %657 = vmatprep.mubr.f32.mxu0 0.0
          %658 = vmatmul.mubr.f32.gmra.mrb[0].mxu0 %v506
          %v659 = vpop.f32.mrb[0].mxu0
          %v660 = vadd.f32 %v531, %v659
          %v661 = vpop.f32.mrb[0].mxu0
          %662 = vmatprep.mubr.f32.mxu0 0.0
          %663 = vmatmul.mubr.f32.gmra.mrb[0].mxu0 %v507
          %v664 = vpop.f32.mrb[0].mxu0
          %v665 = vadd.f32 %v531, %v664
          %v666 = vpop.f32.mrb[0].mxu0
          %667 = vmatprep.mubr.f32.mxu0 0.0
          %668 = vmatmul.mubr.f32.gmra.mrb[0].mxu0 %v508
          %v669 = vpop.f32.mrb[0].mxu0
          %v670 = vadd.f32 %v531, %v669
          %v671 = vpop.f32.mrb[0].mxu0
          %672 = vmatprep.mubr.f32.mxu0 0.0
          %673 = vmatmul.mubr.f32.gmra.mrb[0].mxu0 %v509
          %v674 = vpop.f32.mrb[0].mxu0
          %v675 = vadd.f32 %v531, %v674
          %v676 = vpop.f32.mrb[0].mxu0
          %677 = vdwg.mxu0
          %v678 = vmax.f32 %v600, 0.0
          %v679 = vmax.f32 %v605, 0.0
          %v680 = vmax.f32 %v610, 0.0
          %v681 = vmax.f32 %v615, 0.0
          %v682 = vmax.f32 %v620, 0.0
          %v683 = vmax.f32 %v625, 0.0
          %v684 = vmax.f32 %v630, 0.0
          %v685 = vmax.f32 %v635, 0.0
          %v686 = vmax.f32 %v640, 0.0
          %v687 = vmax.f32 %v645, 0.0
          %v688 = vmax.f32 %v650, 0.0
          %v689 = vmax.f32 %v655, 0.0
          %v690 = vmax.f32 %v660, 0.0
          %v691 = vmax.f32 %v665, 0.0
          %v692 = vmax.f32 %v670, 0.0
          %v693 = vmax.f32 %v675, 0.0
          %694 = vst [vmem:[#allocation2] sm:$0xff] %v678
          %695 = vst [vmem:[#allocation2 + $0x8] sm:$0xff] %v679
          %696 = vst [vmem:[#allocation2 + $0x10] sm:$0xff] %v680
          %697 = vst [vmem:[#allocation2 + $0x18] sm:$0xff] %v681
          %698 = vst [vmem:[#allocation2 + $0x20] sm:$0xff] %v682
          %699 = vst [vmem:[#allocation2 + $0x28] sm:$0xff] %v683
          %700 = vst [vmem:[#allocation2 + $0x30] sm:$0xff] %v684
          %701 = vst [vmem:[#allocation2 + $0x38] sm:$0xff] %v685
          %702 = vst [vmem:[#allocation2 + $0x40] sm:$0xff] %v686
          %703 = vst [vmem:[#allocation2 + $0x48] sm:$0xff] %v687
          %704 = vst [vmem:[#allocation2 + $0x50] sm:$0xff] %v688
          %705 = vst [vmem:[#allocation2 + $0x58] sm:$0xff] %v689
          %706 = vst [vmem:[#allocation2 + $0x60] sm:$0xff] %v690
          %707 = vst [vmem:[#allocation2 + $0x68] sm:$0xff] %v691
          %708 = vst [vmem:[#allocation2 + $0x70] sm:$0xff] %v692
          %709 = vst [vmem:[#allocation2 + $0x78] sm:$0xff] %v693
        $region92: #{tpu_custom_call.1} parent=63 // pred_fallthru
          _
        %v710 = vld [vmem:[#allocation2] sm:$0xff]
        %v711 = vld [vmem:[#allocation2 + $0x8] sm:$0xff]
        %v712 = vld [vmem:[#allocation2 + $0x10] sm:$0xff]
        %v713 = vld [vmem:[#allocation2 + $0x18] sm:$0xff]
        %v714 = vld [vmem:[#allocation2 + $0x20] sm:$0xff]
        %v715 = vld [vmem:[#allocation2 + $0x28] sm:$0xff]
        %v716 = vld [vmem:[#allocation2 + $0x30] sm:$0xff]
        %v717 = vld [vmem:[#allocation2 + $0x38] sm:$0xff]
        %v718 = vld [vmem:[#allocation2 + $0x40] sm:$0xff]
        %v719 = vld [vmem:[#allocation2 + $0x48] sm:$0xff]
        %v720 = vld [vmem:[#allocation2 + $0x50] sm:$0xff]
        %v721 = vld [vmem:[#allocation2 + $0x58] sm:$0xff]
        %v722 = vld [vmem:[#allocation2 + $0x60] sm:$0xff]
        %v723 = vld [vmem:[#allocation2 + $0x68] sm:$0xff]
        %v724 = vld [vmem:[#allocation2 + $0x70] sm:$0xff]
        %v725 = vld [vmem:[#allocation2 + $0x78] sm:$0xff]
        %726 = vadd.xlane.f32.xlu0 %v710
        %v727 = vpop.xlane.xlu0 %726
        %728 = vadd.xlane.f32.xlu0 %v711
        %v729 = vpop.xlane.xlu0 %728
        %730 = vadd.xlane.f32.xlu0 %v712
        %v731 = vpop.xlane.xlu0 %730
        %732 = vadd.xlane.f32.xlu0 %v713
        %v733 = vpop.xlane.xlu0 %732
        %734 = vadd.xlane.f32.xlu0 %v714
        %v735 = vpop.xlane.xlu0 %734
        %736 = vadd.xlane.f32.xlu0 %v715
        %v737 = vpop.xlane.xlu0 %736
        %738 = vadd.xlane.f32.xlu0 %v716
        %v739 = vpop.xlane.xlu0 %738
        %740 = vadd.xlane.f32.xlu0 %v717
        %v741 = vpop.xlane.xlu0 %740
        %742 = vadd.xlane.f32.xlu0 %v718
        %v743 = vpop.xlane.xlu0 %742
        %744 = vadd.xlane.f32.xlu0 %v719
        %v745 = vpop.xlane.xlu0 %744
        %746 = vadd.xlane.f32.xlu0 %v720
        %v747 = vpop.xlane.xlu0 %746
        %748 = vadd.xlane.f32.xlu0 %v721
        %v749 = vpop.xlane.xlu0 %748
        %750 = vadd.xlane.f32.xlu0 %v722
        %v751 = vpop.xlane.xlu0 %750
        %752 = vadd.xlane.f32.xlu0 %v723
        %v753 = vpop.xlane.xlu0 %752
        %754 = vadd.xlane.f32.xlu0 %v724
        %v755 = vpop.xlane.xlu0 %754
        %756 = vadd.xlane.f32.xlu0 %v725
        %v757 = vpop.xlane.xlu0 %756
        %v758 = vmul.f32 %v727, 0.015625
        %v759 = vmul.f32 %v729, 0.015625
        %v760 = vmul.f32 %v731, 0.015625
        %v761 = vmul.f32 %v733, 0.015625
        %v762 = vmul.f32 %v735, 0.015625
        %v763 = vmul.f32 %v737, 0.015625
        %v764 = vmul.f32 %v739, 0.015625
        %v765 = vmul.f32 %v741, 0.015625
        %v766 = vmul.f32 %v743, 0.015625
        %v767 = vmul.f32 %v745, 0.015625
        %v768 = vmul.f32 %v747, 0.015625
        %v769 = vmul.f32 %v749, 0.015625
        %v770 = vmul.f32 %v751, 0.015625
        %v771 = vmul.f32 %v753, 0.015625
        %v772 = vmul.f32 %v755, 0.015625
        %v773 = vmul.f32 %v757, 0.015625
        %v774 = vsub.f32 %v710, %v758
        %v775 = vsub.f32 %v711, %v759
        %v776 = vsub.f32 %v712, %v760
        %v777 = vsub.f32 %v713, %v761
        %v778 = vsub.f32 %v714, %v762
        %v779 = vsub.f32 %v715, %v763
        %v780 = vsub.f32 %v716, %v764
        %v781 = vsub.f32 %v717, %v765
        %v782 = vsub.f32 %v718, %v766
        %v783 = vsub.f32 %v719, %v767
        %v784 = vsub.f32 %v720, %v768
        %v785 = vsub.f32 %v721, %v769
        %v786 = vsub.f32 %v722, %v770
        %v787 = vsub.f32 %v723, %v771
        %v788 = vsub.f32 %v724, %v772
        %v789 = vsub.f32 %v725, %v773
        %v790 = vlaneseq
        %v791 = vand.u32 %v790, 127
        %vm792 = vcmp.lt.s32.totalorder %v791, 64
        %v793 = vsel %vm792, 1, 0
        %vm794 = vcmp.eq.s32.totalorder %v793, 1
        %v795 = vsel %vm794, %v774, 0.0
        %v796 = vsel %vm794, %v775, 0.0
        %v797 = vsel %vm794, %v776, 0.0
        %v798 = vsel %vm794, %v777, 0.0
        %v799 = vsel %vm794, %v778, 0.0
        %v800 = vsel %vm794, %v779, 0.0
        %v801 = vsel %vm794, %v780, 0.0
        %v802 = vsel %vm794, %v781, 0.0
        %v803 = vsel %vm794, %v782, 0.0
        %v804 = vsel %vm794, %v783, 0.0
        %v805 = vsel %vm794, %v784, 0.0
        %v806 = vsel %vm794, %v785, 0.0
        %v807 = vsel %vm794, %v786, 0.0
        %v808 = vsel %vm794, %v787, 0.0
        %v809 = vsel %vm794, %v788, 0.0
        %v810 = vsel %vm794, %v789, 0.0
        %v811 = vmul.f32 %v795, %v795
        %v812 = vmul.f32 %v796, %v796
        %v813 = vmul.f32 %v797, %v797
        %v814 = vmul.f32 %v798, %v798
        %v815 = vmul.f32 %v799, %v799
        %v816 = vmul.f32 %v800, %v800
        %v817 = vmul.f32 %v801, %v801
        %v818 = vmul.f32 %v802, %v802
        %v819 = vmul.f32 %v803, %v803
        %v820 = vmul.f32 %v804, %v804
        %v821 = vmul.f32 %v805, %v805
        %v822 = vmul.f32 %v806, %v806
        %v823 = vmul.f32 %v807, %v807
        %v824 = vmul.f32 %v808, %v808
        %v825 = vmul.f32 %v809, %v809
        %v826 = vmul.f32 %v810, %v810
        %827 = vadd.xlane.f32.xlu0 %v811
        %v828 = vpop.xlane.xlu0 %827
        %829 = vadd.xlane.f32.xlu0 %v812
        %v830 = vpop.xlane.xlu0 %829
        %831 = vadd.xlane.f32.xlu0 %v813
        %v832 = vpop.xlane.xlu0 %831
        %833 = vadd.xlane.f32.xlu0 %v814
        %v834 = vpop.xlane.xlu0 %833
        %835 = vadd.xlane.f32.xlu0 %v815
        %v836 = vpop.xlane.xlu0 %835
        %837 = vadd.xlane.f32.xlu0 %v816
        %v838 = vpop.xlane.xlu0 %837
        %839 = vadd.xlane.f32.xlu0 %v817
        %v840 = vpop.xlane.xlu0 %839
        %841 = vadd.xlane.f32.xlu0 %v818
        %v842 = vpop.xlane.xlu0 %841
        %843 = vadd.xlane.f32.xlu0 %v819
        %v844 = vpop.xlane.xlu0 %843
        %845 = vadd.xlane.f32.xlu0 %v820
        %v846 = vpop.xlane.xlu0 %845
        %847 = vadd.xlane.f32.xlu0 %v821
        %v848 = vpop.xlane.xlu0 %847
        %849 = vadd.xlane.f32.xlu0 %v822
        %v850 = vpop.xlane.xlu0 %849
        %851 = vadd.xlane.f32.xlu0 %v823
        %v852 = vpop.xlane.xlu0 %851
        %853 = vadd.xlane.f32.xlu0 %v824
        %v854 = vpop.xlane.xlu0 %853
        %855 = vadd.xlane.f32.xlu0 %v825
        %v856 = vpop.xlane.xlu0 %855
        %857 = vadd.xlane.f32.xlu0 %v826
        %v858 = vpop.xlane.xlu0 %857
        %v859 = vmul.f32 %v828, 0.015625
        %v860 = vmul.f32 %v830, 0.015625
        %v861 = vmul.f32 %v832, 0.015625
        %v862 = vmul.f32 %v834, 0.015625
        %v863 = vmul.f32 %v836, 0.015625
        %v864 = vmul.f32 %v838, 0.015625
        %v865 = vmul.f32 %v840, 0.015625
        %v866 = vmul.f32 %v842, 0.015625
        %v867 = vmul.f32 %v844, 0.015625
        %v868 = vmul.f32 %v846, 0.015625
        %v869 = vmul.f32 %v848, 0.015625
        %v870 = vmul.f32 %v850, 0.015625
        %v871 = vmul.f32 %v852, 0.015625
        %v872 = vmul.f32 %v854, 0.015625
        %v873 = vmul.f32 %v856, 0.015625
        %v874 = vmul.f32 %v858, 0.015625
        %v875 = vadd.f32 %v859, 1e-05
        %v876 = vadd.f32 %v860, 1e-05
        %v877 = vadd.f32 %v861, 1e-05
        %v878 = vadd.f32 %v862, 1e-05
        %v879 = vadd.f32 %v863, 1e-05
        %v880 = vadd.f32 %v864, 1e-05
        %v881 = vadd.f32 %v865, 1e-05
        %v882 = vadd.f32 %v866, 1e-05
        %v883 = vadd.f32 %v867, 1e-05
        %v884 = vadd.f32 %v868, 1e-05
        %v885 = vadd.f32 %v869, 1e-05
        %v886 = vadd.f32 %v870, 1e-05
        %v887 = vadd.f32 %v871, 1e-05
        %v888 = vadd.f32 %v872, 1e-05
        %v889 = vadd.f32 %v873, 1e-05
        %v890 = vadd.f32 %v874, 1e-05
        %v891 = vrsqrt.pop %v875
        %v892 = vrsqrt.pop %v876
        %v893 = vrsqrt.pop %v877
        %v894 = vrsqrt.pop %v878
        %v895 = vrsqrt.pop %v879
        %v896 = vrsqrt.pop %v880
        %v897 = vrsqrt.pop %v881
        %v898 = vrsqrt.pop %v882
        %v899 = vrsqrt.pop %v883
        %v900 = vrsqrt.pop %v884
        %v901 = vrsqrt.pop %v885
        %v902 = vrsqrt.pop %v886
        %v903 = vrsqrt.pop %v887
        %v904 = vrsqrt.pop %v888
        %v905 = vrsqrt.pop %v889
        %v906 = vrsqrt.pop %v890
        %v907 = vmul.f32 %v774, %v891
        %v908 = vmul.f32 %v775, %v892
        %v909 = vmul.f32 %v776, %v893
        %v910 = vmul.f32 %v777, %v894
        %v911 = vmul.f32 %v778, %v895
        %v912 = vmul.f32 %v779, %v896
        %v913 = vmul.f32 %v780, %v897
        %v914 = vmul.f32 %v781, %v898
        %v915 = vmul.f32 %v782, %v899
        %v916 = vmul.f32 %v783, %v900
        %v917 = vmul.f32 %v784, %v901
        %v918 = vmul.f32 %v785, %v902
        %v919 = vmul.f32 %v786, %v903
        %v920 = vmul.f32 %v787, %v904
        %v921 = vmul.f32 %v788, %v905
        %v922 = vmul.f32 %v789, %v906
        %s923 = scalar_lea.vmem %s3, %s36
        %v924 = vld [vmem:[%s923] sm:$0x1]
        %v926 = vlaneseq
        %v927 = vshrl.u32 %v926, 7
        %v928 = vsub.s32 0, %v927
        %v929 = vrot.slane %v924, %v928
        %v931 = vmul.f32 %v907, %v929
        %v932 = vmul.f32 %v908, %v929
        %v933 = vmul.f32 %v909, %v929
        %v934 = vmul.f32 %v910, %v929
        %v935 = vmul.f32 %v911, %v929
        %v936 = vmul.f32 %v912, %v929
        %v937 = vmul.f32 %v913, %v929
        %v938 = vmul.f32 %v914, %v929
        %v939 = vmul.f32 %v915, %v929
        %v940 = vmul.f32 %v916, %v929
        %v941 = vmul.f32 %v917, %v929
        %v942 = vmul.f32 %v918, %v929
        %v943 = vmul.f32 %v919, %v929
        %v944 = vmul.f32 %v920, %v929
        %v945 = vmul.f32 %v921, %v929
        %v946 = vmul.f32 %v922, %v929
        %s947 = scalar_lea.vmem %s4, %s36
        %v948 = vld [vmem:[%s947] sm:$0x1]
        %v950 = vlaneseq
        %v951 = vshrl.u32 %v950, 7
        %v952 = vsub.s32 0, %v951
        %v953 = vrot.slane %v948, %v952
        %v955 = vadd.f32 %v931, %v953
        %v956 = vadd.f32 %v932, %v953
        %v957 = vadd.f32 %v933, %v953
        %v958 = vadd.f32 %v934, %v953
        %v959 = vadd.f32 %v935, %v953
        %v960 = vadd.f32 %v936, %v953
        %v961 = vadd.f32 %v937, %v953
        %v962 = vadd.f32 %v938, %v953
        %v963 = vadd.f32 %v939, %v953
        %v964 = vadd.f32 %v940, %v953
        %v965 = vadd.f32 %v941, %v953
        %v966 = vadd.f32 %v942, %v953
        %v967 = vadd.f32 %v943, %v953
        %v968 = vadd.f32 %v944, %v953
        %v969 = vadd.f32 %v945, %v953
        %v970 = vadd.f32 %v946, %v953
        %s971 = smul.u32 %s36, 128
        %s972 = scalar_lea.vmem [#allocation9], %s971
        %v973 = vld [vmem:[%s972] sm:$0xff]
        %v974 = vld [vmem:[%s972 + $0x8] sm:$0xff]
        %v975 = vld [vmem:[%s972 + $0x10] sm:$0xff]
        %v976 = vld [vmem:[%s972 + $0x18] sm:$0xff]
        %v977 = vld [vmem:[%s972 + $0x20] sm:$0xff]
        %v978 = vld [vmem:[%s972 + $0x28] sm:$0xff]
        %v979 = vld [vmem:[%s972 + $0x30] sm:$0xff]
        %v980 = vld [vmem:[%s972 + $0x38] sm:$0xff]
        %v981 = vld [vmem:[%s972 + $0x40] sm:$0xff]
        %v982 = vld [vmem:[%s972 + $0x48] sm:$0xff]
        %v983 = vld [vmem:[%s972 + $0x50] sm:$0xff]
        %v984 = vld [vmem:[%s972 + $0x58] sm:$0xff]
        %v985 = vld [vmem:[%s972 + $0x60] sm:$0xff]
        %v986 = vld [vmem:[%s972 + $0x68] sm:$0xff]
        %v987 = vld [vmem:[%s972 + $0x70] sm:$0xff]
        %v988 = vld [vmem:[%s972 + $0x78] sm:$0xff]
        %s989 = scalar_lea.vmem %s6, %s36
        %v990 = vld [vmem:[%s989] sm:$0x1]
        %v992 = vlaneseq
        %v993 = vshrl.u32 %v992, 7
        %v994 = vsub.s32 0, %v993
        %v995 = vrot.slane %v990, %v994
        %997 = vmatprep.subr.mxu0 0.0
        %998 = vmatpush1.msra.mxu0 %v973
        %999 = vmatprep.subr.mxu0 0.0
        %1000 = vmatpush1.msra.mxu0 %v974
        %1001 = vmatprep.subr.mxu0 0.0
        %1002 = vmatpush1.msra.mxu0 %v975
        %1003 = vmatprep.subr.mxu0 0.0
        %1004 = vmatpush1.msra.mxu0 %v976
        %1005 = vmatprep.subr.mxu0 0.0
        %1006 = vmatpush1.msra.mxu0 %v977
        %1007 = vmatprep.subr.mxu0 0.0
        %1008 = vmatpush1.msra.mxu0 %v978
        %1009 = vmatprep.subr.mxu0 0.0
        %1010 = vmatpush1.msra.mxu0 %v979
        %1011 = vmatprep.subr.mxu0 0.0
        %1012 = vmatpush1.msra.mxu0 %v980
        %1013 = vmatprep.subr.mxu0 0.0
        %1014 = vmatpush1.msra.mxu0 %v981
        %1015 = vmatprep.subr.mxu0 0.0
        %1016 = vmatpush1.msra.mxu0 %v982
        %1017 = vmatprep.subr.mxu0 0.0
        %1018 = vmatpush1.msra.mxu0 %v983
        %1019 = vmatprep.subr.mxu0 0.0
        %1020 = vmatpush1.msra.mxu0 %v984
        %1021 = vmatprep.subr.mxu0 0.0
        %1022 = vmatpush1.msra.mxu0 %v985
        %1023 = vmatprep.subr.mxu0 0.0
        %1024 = vmatpush1.msra.mxu0 %v986
        %1025 = vmatprep.subr.mxu0 0.0
        %1026 = vmatpush1.msra.mxu0 %v987
        %1027 = vmatprep.subr.mxu0 0.0
        %1028 = vmatpush1.msra.mxu0 %v988
        %1029 = vmatprep.subr.mxu0 0.0
        %1030 = vmatpush1.msra.mxu0 0.0
        %1031 = vmatprep.subr.mxu0 0.0
        %1032 = vmatpush1.msra.mxu0 0.0
        %1033 = vmatprep.subr.mxu0 0.0
        %1034 = vmatpush1.msra.mxu0 0.0
        %1035 = vmatprep.subr.mxu0 0.0
        %1036 = vmatpush1.msra.mxu0 0.0
        %1037 = vmatprep.subr.mxu0 0.0
        %1038 = vmatpush1.msra.mxu0 0.0
        %1039 = vmatprep.subr.mxu0 0.0
        %1040 = vmatpush1.msra.mxu0 0.0
        %1041 = vmatprep.subr.mxu0 0.0
        %1042 = vmatpush1.msra.mxu0 0.0
        %1043 = vmatprep.subr.mxu0 0.0
        %1044 = vmatpush1.msra.mxu0 0.0
        %1045 = vmatprep.subr.mxu0 0.0
        %1046 = vmatpush1.msra.mxu0 0.0
        %1047 = vmatprep.subr.mxu0 0.0
        %1048 = vmatpush1.msra.mxu0 0.0
        %1049 = vmatprep.subr.mxu0 0.0
        %1050 = vmatpush1.msra.mxu0 0.0
        %1051 = vmatprep.subr.mxu0 0.0
        %1052 = vmatpush1.msra.mxu0 0.0
        %1053 = vmatprep.subr.mxu0 0.0
        %1054 = vmatpush1.msra.mxu0 0.0
        %1055 = vmatprep.subr.mxu0 0.0
        %1056 = vmatpush1.msra.mxu0 0.0
        %1057 = vmatprep.subr.mxu0 0.0
        %1058 = vmatpush1.msra.mxu0 0.0
        %1059 = vmatprep.subr.mxu0 0.0
        %1060 = vmatpush1.msra.mxu0 0.0
        %1061 = vmatprep.mubr.f32.mxu0 0.0
        %1062 = vmatmul.mubr.f32.gmra.mrb[0].mxu0 %v955
        %v1063 = vpop.f32.mrb[0].mxu0
        %v1064 = vadd.f32 %v995, %v1063
        %v1065 = vpop.f32.mrb[0].mxu0
        %1066 = vmatprep.mubr.f32.mxu0 0.0
        %1067 = vmatmul.mubr.f32.gmra.mrb[0].mxu0 %v956
        %v1068 = vpop.f32.mrb[0].mxu0
        %v1069 = vadd.f32 %v995, %v1068
        %v1070 = vpop.f32.mrb[0].mxu0
        %1071 = vmatprep.mubr.f32.mxu0 0.0
        %1072 = vmatmul.mubr.f32.gmra.mrb[0].mxu0 %v957
        %v1073 = vpop.f32.mrb[0].mxu0
        %v1074 = vadd.f32 %v995, %v1073
        %v1075 = vpop.f32.mrb[0].mxu0
        %1076 = vmatprep.mubr.f32.mxu0 0.0
        %1077 = vmatmul.mubr.f32.gmra.mrb[0].mxu0 %v958
        %v1078 = vpop.f32.mrb[0].mxu0
        %v1079 = vadd.f32 %v995, %v1078
        %v1080 = vpop.f32.mrb[0].mxu0
        %1081 = vmatprep.mubr.f32.mxu0 0.0
        %1082 = vmatmul.mubr.f32.gmra.mrb[0].mxu0 %v959
        %v1083 = vpop.f32.mrb[0].mxu0
        %v1084 = vadd.f32 %v995, %v1083
        %v1085 = vpop.f32.mrb[0].mxu0
        %1086 = vmatprep.mubr.f32.mxu0 0.0
        %1087 = vmatmul.mubr.f32.gmra.mrb[0].mxu0 %v960
        %v1088 = vpop.f32.mrb[0].mxu0
        %v1089 = vadd.f32 %v995, %v1088
        %v1090 = vpop.f32.mrb[0].mxu0
        %1091 = vmatprep.mubr.f32.mxu0 0.0
        %1092 = vmatmul.mubr.f32.gmra.mrb[0].mxu0 %v961
        %v1093 = vpop.f32.mrb[0].mxu0
        %v1094 = vadd.f32 %v995, %v1093
        %v1095 = vpop.f32.mrb[0].mxu0
        %1096 = vmatprep.mubr.f32.mxu0 0.0
        %1097 = vmatmul.mubr.f32.gmra.mrb[0].mxu0 %v962
        %v1098 = vpop.f32.mrb[0].mxu0
        %v1099 = vadd.f32 %v995, %v1098
        %v1100 = vpop.f32.mrb[0].mxu0
        %1101 = vmatprep.mubr.f32.mxu0 0.0
        %1102 = vmatmul.mubr.f32.gmra.mrb[0].mxu0 %v963
        %v1103 = vpop.f32.mrb[0].mxu0
        %v1104 = vadd.f32 %v995, %v1103
        %v1105 = vpop.f32.mrb[0].mxu0
        %1106 = vmatprep.mubr.f32.mxu0 0.0
        %1107 = vmatmul.mubr.f32.gmra.mrb[0].mxu0 %v964
        %v1108 = vpop.f32.mrb[0].mxu0
        %v1109 = vadd.f32 %v995, %v1108
        %v1110 = vpop.f32.mrb[0].mxu0
        %1111 = vmatprep.mubr.f32.mxu0 0.0
        %1112 = vmatmul.mubr.f32.gmra.mrb[0].mxu0 %v965
        %v1113 = vpop.f32.mrb[0].mxu0
        %v1114 = vadd.f32 %v995, %v1113
        %v1115 = vpop.f32.mrb[0].mxu0
        %1116 = vmatprep.mubr.f32.mxu0 0.0
        %1117 = vmatmul.mubr.f32.gmra.mrb[0].mxu0 %v966
        %v1118 = vpop.f32.mrb[0].mxu0
        %v1119 = vadd.f32 %v995, %v1118
        %v1120 = vpop.f32.mrb[0].mxu0
        %1121 = vmatprep.mubr.f32.mxu0 0.0
        %1122 = vmatmul.mubr.f32.gmra.mrb[0].mxu0 %v967
        %v1123 = vpop.f32.mrb[0].mxu0
        %v1124 = vadd.f32 %v995, %v1123
        %v1125 = vpop.f32.mrb[0].mxu0
        %1126 = vmatprep.mubr.f32.mxu0 0.0
        %1127 = vmatmul.mubr.f32.gmra.mrb[0].mxu0 %v968
        %v1128 = vpop.f32.mrb[0].mxu0
        %v1129 = vadd.f32 %v995, %v1128
        %v1130 = vpop.f32.mrb[0].mxu0
        %1131 = vmatprep.mubr.f32.mxu0 0.0
        %1132 = vmatmul.mubr.f32.gmra.mrb[0].mxu0 %v969
        %v1133 = vpop.f32.mrb[0].mxu0
        %v1134 = vadd.f32 %v995, %v1133
        %v1135 = vpop.f32.mrb[0].mxu0
        %1136 = vmatprep.mubr.f32.mxu0 0.0
        %1137 = vmatmul.mubr.f32.gmra.mrb[0].mxu0 %v970
        %v1138 = vpop.f32.mrb[0].mxu0
        %v1139 = vadd.f32 %v995, %v1138
        %v1140 = vpop.f32.mrb[0].mxu0
        %1141 = vdwg.mxu0
        %v1142 = vmax.f32 %v1064, 0.0
        %v1143 = vmax.f32 %v1069, 0.0
        %v1144 = vmax.f32 %v1074, 0.0
        %v1145 = vmax.f32 %v1079, 0.0
        %v1146 = vmax.f32 %v1084, 0.0
        %v1147 = vmax.f32 %v1089, 0.0
        %v1148 = vmax.f32 %v1094, 0.0
        %v1149 = vmax.f32 %v1099, 0.0
        %v1150 = vmax.f32 %v1104, 0.0
        %v1151 = vmax.f32 %v1109, 0.0
        %v1152 = vmax.f32 %v1114, 0.0
        %v1153 = vmax.f32 %v1119, 0.0
        %v1154 = vmax.f32 %v1124, 0.0
        %v1155 = vmax.f32 %v1129, 0.0
        %v1156 = vmax.f32 %v1134, 0.0
        %v1157 = vmax.f32 %v1139, 0.0
        %s1158 = scalar_lea.vmem [#allocation11], %s971
        %v1159 = vld [vmem:[%s1158] sm:$0xff]
        %v1160 = vld [vmem:[%s1158 + $0x8] sm:$0xff]
        %v1161 = vld [vmem:[%s1158 + $0x10] sm:$0xff]
        %v1162 = vld [vmem:[%s1158 + $0x18] sm:$0xff]
        %v1163 = vld [vmem:[%s1158 + $0x20] sm:$0xff]
        %v1164 = vld [vmem:[%s1158 + $0x28] sm:$0xff]
        %v1165 = vld [vmem:[%s1158 + $0x30] sm:$0xff]
        %v1166 = vld [vmem:[%s1158 + $0x38] sm:$0xff]
        %v1167 = vld [vmem:[%s1158 + $0x40] sm:$0xff]
        %v1168 = vld [vmem:[%s1158 + $0x48] sm:$0xff]
        %v1169 = vld [vmem:[%s1158 + $0x50] sm:$0xff]
        %v1170 = vld [vmem:[%s1158 + $0x58] sm:$0xff]
        %v1171 = vld [vmem:[%s1158 + $0x60] sm:$0xff]
        %v1172 = vld [vmem:[%s1158 + $0x68] sm:$0xff]
        %v1173 = vld [vmem:[%s1158 + $0x70] sm:$0xff]
        %v1174 = vld [vmem:[%s1158 + $0x78] sm:$0xff]
        %1175 = vmatprep.subr.mxu0 0.0
        %1176 = vmatpush1.msra.mxu0 %v1159
        %1177 = vmatprep.subr.mxu0 0.0
        %1178 = vmatpush1.msra.mxu0 %v1160
        %1179 = vmatprep.subr.mxu0 0.0
        %1180 = vmatpush1.msra.mxu0 %v1161
        %1181 = vmatprep.subr.mxu0 0.0
        %1182 = vmatpush1.msra.mxu0 %v1162
        %1183 = vmatprep.subr.mxu0 0.0
        %1184 = vmatpush1.msra.mxu0 %v1163
        %1185 = vmatprep.subr.mxu0 0.0
        %1186 = vmatpush1.msra.mxu0 %v1164
        %1187 = vmatprep.subr.mxu0 0.0
        %1188 = vmatpush1.msra.mxu0 %v1165
        %1189 = vmatprep.subr.mxu0 0.0
        %1190 = vmatpush1.msra.mxu0 %v1166
        %1191 = vmatprep.subr.mxu0 0.0
        %1192 = vmatpush1.msra.mxu0 %v1167
        %1193 = vmatprep.subr.mxu0 0.0
        %1194 = vmatpush1.msra.mxu0 %v1168
        %1195 = vmatprep.subr.mxu0 0.0
        %1196 = vmatpush1.msra.mxu0 %v1169
        %1197 = vmatprep.subr.mxu0 0.0
        %1198 = vmatpush1.msra.mxu0 %v1170
        %1199 = vmatprep.subr.mxu0 0.0
        %1200 = vmatpush1.msra.mxu0 %v1171
        %1201 = vmatprep.subr.mxu0 0.0
        %1202 = vmatpush1.msra.mxu0 %v1172
        %1203 = vmatprep.subr.mxu0 0.0
        %1204 = vmatpush1.msra.mxu0 %v1173
        %1205 = vmatprep.subr.mxu0 0.0
        %1206 = vmatpush1.msra.mxu0 %v1174
        %1207 = vmatprep.subr.mxu0 0.0
        %1208 = vmatpush1.msra.mxu0 0.0
        %1209 = vmatprep.subr.mxu0 0.0
        %1210 = vmatpush1.msra.mxu0 0.0
        %1211 = vmatprep.subr.mxu0 0.0
        %1212 = vmatpush1.msra.mxu0 0.0
        %1213 = vmatprep.subr.mxu0 0.0
        %1214 = vmatpush1.msra.mxu0 0.0
        %1215 = vmatprep.subr.mxu0 0.0
        %1216 = vmatpush1.msra.mxu0 0.0
        %1217 = vmatprep.subr.mxu0 0.0
        %1218 = vmatpush1.msra.mxu0 0.0
        %1219 = vmatprep.subr.mxu0 0.0
        %1220 = vmatpush1.msra.mxu0 0.0
        %1221 = vmatprep.subr.mxu0 0.0
        %1222 = vmatpush1.msra.mxu0 0.0
        %1223 = vmatprep.subr.mxu0 0.0
        %1224 = vmatpush1.msra.mxu0 0.0
        %1225 = vmatprep.subr.mxu0 0.0
        %1226 = vmatpush1.msra.mxu0 0.0
        %1227 = vmatprep.subr.mxu0 0.0
        %1228 = vmatpush1.msra.mxu0 0.0
        %1229 = vmatprep.subr.mxu0 0.0
        %1230 = vmatpush1.msra.mxu0 0.0
        %1231 = vmatprep.subr.mxu0 0.0
        %1232 = vmatpush1.msra.mxu0 0.0
        %1233 = vmatprep.subr.mxu0 0.0
        %1234 = vmatpush1.msra.mxu0 0.0
        %1235 = vmatprep.subr.mxu0 0.0
        %1236 = vmatpush1.msra.mxu0 0.0
        %1237 = vmatprep.subr.mxu0 0.0
        %1238 = vmatpush1.msra.mxu0 0.0
        %1239 = vmatprep.mubr.f32.mxu0 0.0
        %1240 = vmatmul.mubr.f32.gmra.mrb[0].mxu0 %v1142
        %v1241 = vpop.f32.mrb[0].mxu0
        %v1242 = vadd.f32 0.0, %v1241
        %v1243 = vpop.f32.mrb[0].mxu0
        %1244 = vmatprep.mubr.f32.mxu0 0.0
        %1245 = vmatmul.mubr.f32.gmra.mrb[0].mxu0 %v1143
        %v1246 = vpop.f32.mrb[0].mxu0
        %v1247 = vadd.f32 0.0, %v1246
        %v1248 = vpop.f32.mrb[0].mxu0
        %1249 = vmatprep.mubr.f32.mxu0 0.0
        %1250 = vmatmul.mubr.f32.gmra.mrb[0].mxu0 %v1144
        %v1251 = vpop.f32.mrb[0].mxu0
        %v1252 = vadd.f32 0.0, %v1251
        %v1253 = vpop.f32.mrb[0].mxu0
        %1254 = vmatprep.mubr.f32.mxu0 0.0
        %1255 = vmatmul.mubr.f32.gmra.mrb[0].mxu0 %v1145
        %v1256 = vpop.f32.mrb[0].mxu0
        %v1257 = vadd.f32 0.0, %v1256
        %v1258 = vpop.f32.mrb[0].mxu0
        %1259 = vmatprep.mubr.f32.mxu0 0.0
        %1260 = vmatmul.mubr.f32.gmra.mrb[0].mxu0 %v1146
        %v1261 = vpop.f32.mrb[0].mxu0
        %v1262 = vadd.f32 0.0, %v1261
        %v1263 = vpop.f32.mrb[0].mxu0
        %1264 = vmatprep.mubr.f32.mxu0 0.0
        %1265 = vmatmul.mubr.f32.gmra.mrb[0].mxu0 %v1147
        %v1266 = vpop.f32.mrb[0].mxu0
        %v1267 = vadd.f32 0.0, %v1266
        %v1268 = vpop.f32.mrb[0].mxu0
        %1269 = vmatprep.mubr.f32.mxu0 0.0
        %1270 = vmatmul.mubr.f32.gmra.mrb[0].mxu0 %v1148
        %v1271 = vpop.f32.mrb[0].mxu0
        %v1272 = vadd.f32 0.0, %v1271
        %v1273 = vpop.f32.mrb[0].mxu0
        %1274 = vmatprep.mubr.f32.mxu0 0.0
        %1275 = vmatmul.mubr.f32.gmra.mrb[0].mxu0 %v1149
        %v1276 = vpop.f32.mrb[0].mxu0
        %v1277 = vadd.f32 0.0, %v1276
        %v1278 = vpop.f32.mrb[0].mxu0
        %1279 = vmatprep.mubr.f32.mxu0 0.0
        %1280 = vmatmul.mubr.f32.gmra.mrb[0].mxu0 %v1150
        %v1281 = vpop.f32.mrb[0].mxu0
        %v1282 = vadd.f32 0.0, %v1281
        %v1283 = vpop.f32.mrb[0].mxu0
        %1284 = vmatprep.mubr.f32.mxu0 0.0
        %1285 = vmatmul.mubr.f32.gmra.mrb[0].mxu0 %v1151
        %v1286 = vpop.f32.mrb[0].mxu0
        %v1287 = vadd.f32 0.0, %v1286
        %v1288 = vpop.f32.mrb[0].mxu0
        %1289 = vmatprep.mubr.f32.mxu0 0.0
        %1290 = vmatmul.mubr.f32.gmra.mrb[0].mxu0 %v1152
        %v1291 = vpop.f32.mrb[0].mxu0
        %v1292 = vadd.f32 0.0, %v1291
        %v1293 = vpop.f32.mrb[0].mxu0
        %1294 = vmatprep.mubr.f32.mxu0 0.0
        %1295 = vmatmul.mubr.f32.gmra.mrb[0].mxu0 %v1153
        %v1296 = vpop.f32.mrb[0].mxu0
        %v1297 = vadd.f32 0.0, %v1296
        %v1298 = vpop.f32.mrb[0].mxu0
        %1299 = vmatprep.mubr.f32.mxu0 0.0
        %1300 = vmatmul.mubr.f32.gmra.mrb[0].mxu0 %v1154
        %v1301 = vpop.f32.mrb[0].mxu0
        %v1302 = vadd.f32 0.0, %v1301
        %v1303 = vpop.f32.mrb[0].mxu0
        %1304 = vmatprep.mubr.f32.mxu0 0.0
        %1305 = vmatmul.mubr.f32.gmra.mrb[0].mxu0 %v1155
        %v1306 = vpop.f32.mrb[0].mxu0
        %v1307 = vadd.f32 0.0, %v1306
        %v1308 = vpop.f32.mrb[0].mxu0
        %1309 = vmatprep.mubr.f32.mxu0 0.0
        %1310 = vmatmul.mubr.f32.gmra.mrb[0].mxu0 %v1156
        %v1311 = vpop.f32.mrb[0].mxu0
        %v1312 = vadd.f32 0.0, %v1311
        %v1313 = vpop.f32.mrb[0].mxu0
        %1314 = vmatprep.mubr.f32.mxu0 0.0
        %1315 = vmatmul.mubr.f32.gmra.mrb[0].mxu0 %v1157
        %v1316 = vpop.f32.mrb[0].mxu0
        %v1317 = vadd.f32 0.0, %v1316
        %v1318 = vpop.f32.mrb[0].mxu0
        %1319 = vdwg.mxu0
        %v1320 = vadd.f32 %v710, %v1242
        %v1321 = vadd.f32 %v711, %v1247
        %v1322 = vadd.f32 %v712, %v1252
        %v1323 = vadd.f32 %v713, %v1257
        %v1324 = vadd.f32 %v714, %v1262
        %v1325 = vadd.f32 %v715, %v1267
        %v1326 = vadd.f32 %v716, %v1272
        %v1327 = vadd.f32 %v717, %v1277
        %v1328 = vadd.f32 %v718, %v1282
        %v1329 = vadd.f32 %v719, %v1287
        %v1330 = vadd.f32 %v720, %v1292
        %v1331 = vadd.f32 %v721, %v1297
        %v1332 = vadd.f32 %v722, %v1302
        %v1333 = vadd.f32 %v723, %v1307
        %v1334 = vadd.f32 %v724, %v1312
        %v1335 = vadd.f32 %v725, %v1317
        %s1336 = scalar_lea.vmem %s8, %s36
        %v1337 = vld [vmem:[%s1336] sm:$0x1]
        %v1339 = vlaneseq
        %v1340 = vshrl.u32 %v1339, 7
        %v1341 = vsub.s32 0, %v1340
        %v1342 = vrot.slane %v1337, %v1341
        %v1344 = vadd.f32 %v1320, %v1342
        %v1345 = vadd.f32 %v1321, %v1342
        %v1346 = vadd.f32 %v1322, %v1342
        %v1347 = vadd.f32 %v1323, %v1342
        %v1348 = vadd.f32 %v1324, %v1342
        %v1349 = vadd.f32 %v1325, %v1342
        %v1350 = vadd.f32 %v1326, %v1342
        %v1351 = vadd.f32 %v1327, %v1342
        %v1352 = vadd.f32 %v1328, %v1342
        %v1353 = vadd.f32 %v1329, %v1342
        %v1354 = vadd.f32 %v1330, %v1342
        %v1355 = vadd.f32 %v1331, %v1342
        %v1356 = vadd.f32 %v1332, %v1342
        %v1357 = vadd.f32 %v1333, %v1342
        %v1358 = vadd.f32 %v1334, %v1342
        %v1359 = vadd.f32 %v1335, %v1342
        %1360 = vst [vmem:[#allocation2] sm:$0xff] %v1344
        %1361 = vst [vmem:[#allocation2 + $0x8] sm:$0xff] %v1345
        %1362 = vst [vmem:[#allocation2 + $0x10] sm:$0xff] %v1346
        %1363 = vst [vmem:[#allocation2 + $0x18] sm:$0xff] %v1347
        %1364 = vst [vmem:[#allocation2 + $0x20] sm:$0xff] %v1348
        %1365 = vst [vmem:[#allocation2 + $0x28] sm:$0xff] %v1349
        %1366 = vst [vmem:[#allocation2 + $0x30] sm:$0xff] %v1350
        %1367 = vst [vmem:[#allocation2 + $0x38] sm:$0xff] %v1351
        %1368 = vst [vmem:[#allocation2 + $0x40] sm:$0xff] %v1352
        %1369 = vst [vmem:[#allocation2 + $0x48] sm:$0xff] %v1353
        %1370 = vst [vmem:[#allocation2 + $0x50] sm:$0xff] %v1354
        %1371 = vst [vmem:[#allocation2 + $0x58] sm:$0xff] %v1355
        %1372 = vst [vmem:[#allocation2 + $0x60] sm:$0xff] %v1356
        %1373 = vst [vmem:[#allocation2 + $0x68] sm:$0xff] %v1357
        %1374 = vst [vmem:[#allocation2 + $0x70] sm:$0xff] %v1358
        %1375 = vst [vmem:[#allocation2 + $0x78] sm:$0xff] %v1359
        %p1376 = scmp.eq.s32.totalorder %s36, 5
        // Predicated region
        $region93: #{tpu_custom_call.1} parent=63 // pred_check
          %p1377 = pneg %p1376
        $region94: #{tpu_custom_call.1} parent=63 // pred_check_branch
          %1379 = sbr.rel (%p1377) target = $region96
        $region95: #{tpu_custom_call.1} parent=63 // pred_region
          %v1380 = vld [vmem:[#allocation12] sm:$0xff]
          %v1381 = vld [vmem:[#allocation12 + $0x8] sm:$0xff]
          %v1382 = vld [vmem:[#allocation12 + $0x10] sm:$0xff]
          %v1383 = vld [vmem:[#allocation12 + $0x18] sm:$0xff]
          %v1384 = vld [vmem:[#allocation12 + $0x20] sm:$0xff]
          %v1385 = vld [vmem:[#allocation12 + $0x28] sm:$0xff]
          %v1386 = vld [vmem:[#allocation12 + $0x30] sm:$0xff]
          %v1387 = vld [vmem:[#allocation12 + $0x38] sm:$0xff]
          %v1388 = vld [vmem:[#allocation12 + $0x40] sm:$0xff]
          %v1389 = vld [vmem:[#allocation12 + $0x48] sm:$0xff]
          %v1390 = vld [vmem:[#allocation12 + $0x50] sm:$0xff]
          %v1391 = vld [vmem:[#allocation12 + $0x58] sm:$0xff]
          %v1392 = vld [vmem:[#allocation12 + $0x60] sm:$0xff]
          %v1393 = vld [vmem:[#allocation12 + $0x68] sm:$0xff]
          %v1394 = vld [vmem:[#allocation12 + $0x70] sm:$0xff]
          %v1395 = vld [vmem:[#allocation12 + $0x78] sm:$0xff]
          %v1396 = vld [vmem:[%s10] sm:$0x1]
          %v1398 = vlaneseq
          %v1399 = vshrl.u32 %v1398, 7
          %v1400 = vsub.s32 0, %v1399
          %v1401 = vrot.slane %v1396, %v1400
          %1403 = vmatprep.subr.mxu0 0.0
          %1404 = vmatpush1.msra.mxu0 %v1380
          %1405 = vmatprep.subr.mxu0 0.0
          %1406 = vmatpush1.msra.mxu0 %v1381
          %1407 = vmatprep.subr.mxu0 0.0
          %1408 = vmatpush1.msra.mxu0 %v1382
          %1409 = vmatprep.subr.mxu0 0.0
          %1410 = vmatpush1.msra.mxu0 %v1383
          %1411 = vmatprep.subr.mxu0 0.0
          %1412 = vmatpush1.msra.mxu0 %v1384
          %1413 = vmatprep.subr.mxu0 0.0
          %1414 = vmatpush1.msra.mxu0 %v1385
          %1415 = vmatprep.subr.mxu0 0.0
          %1416 = vmatpush1.msra.mxu0 %v1386
          %1417 = vmatprep.subr.mxu0 0.0
          %1418 = vmatpush1.msra.mxu0 %v1387
          %1419 = vmatprep.subr.mxu0 0.0
          %1420 = vmatpush1.msra.mxu0 %v1388
          %1421 = vmatprep.subr.mxu0 0.0
          %1422 = vmatpush1.msra.mxu0 %v1389
          %1423 = vmatprep.subr.mxu0 0.0
          %1424 = vmatpush1.msra.mxu0 %v1390
          %1425 = vmatprep.subr.mxu0 0.0
          %1426 = vmatpush1.msra.mxu0 %v1391
          %1427 = vmatprep.subr.mxu0 0.0
          %1428 = vmatpush1.msra.mxu0 %v1392
          %1429 = vmatprep.subr.mxu0 0.0
          %1430 = vmatpush1.msra.mxu0 %v1393
          %1431 = vmatprep.subr.mxu0 0.0
          %1432 = vmatpush1.msra.mxu0 %v1394
          %1433 = vmatprep.subr.mxu0 0.0
          %1434 = vmatpush1.msra.mxu0 %v1395
          %1435 = vmatprep.subr.mxu0 0.0
          %1436 = vmatpush1.msra.mxu0 0.0
          %1437 = vmatprep.subr.mxu0 0.0
          %1438 = vmatpush1.msra.mxu0 0.0
          %1439 = vmatprep.subr.mxu0 0.0
          %1440 = vmatpush1.msra.mxu0 0.0
          %1441 = vmatprep.subr.mxu0 0.0
          %1442 = vmatpush1.msra.mxu0 0.0
          %1443 = vmatprep.subr.mxu0 0.0
          %1444 = vmatpush1.msra.mxu0 0.0
          %1445 = vmatprep.subr.mxu0 0.0
          %1446 = vmatpush1.msra.mxu0 0.0
          %1447 = vmatprep.subr.mxu0 0.0
          %1448 = vmatpush1.msra.mxu0 0.0
          %1449 = vmatprep.subr.mxu0 0.0
          %1450 = vmatpush1.msra.mxu0 0.0
          %1451 = vmatprep.subr.mxu0 0.0
          %1452 = vmatpush1.msra.mxu0 0.0
          %1453 = vmatprep.subr.mxu0 0.0
          %1454 = vmatpush1.msra.mxu0 0.0
          %1455 = vmatprep.subr.mxu0 0.0
          %1456 = vmatpush1.msra.mxu0 0.0
          %1457 = vmatprep.subr.mxu0 0.0
          %1458 = vmatpush1.msra.mxu0 0.0
          %1459 = vmatprep.subr.mxu0 0.0
          %1460 = vmatpush1.msra.mxu0 0.0
          %1461 = vmatprep.subr.mxu0 0.0
          %1462 = vmatpush1.msra.mxu0 0.0
          %1463 = vmatprep.subr.mxu0 0.0
          %1464 = vmatpush1.msra.mxu0 0.0
          %1465 = vmatprep.subr.mxu0 0.0
          %1466 = vmatpush1.msra.mxu0 0.0
          %1467 = vmatprep.mubr.f32.mxu0 0.0
          %1468 = vmatmul.mubr.f32.gmra.mrb[0].mxu0 %v1344
          %v1469 = vpop.f32.mrb[0].mxu0
          %v1470 = vadd.f32 %v1401, %v1469
          %v1471 = vpop.f32.mrb[0].mxu0
          %1472 = vmatprep.mubr.f32.mxu0 0.0
          %1473 = vmatmul.mubr.f32.gmra.mrb[0].mxu0 %v1345
          %v1474 = vpop.f32.mrb[0].mxu0
          %v1475 = vadd.f32 %v1401, %v1474
          %v1476 = vpop.f32.mrb[0].mxu0
          %1477 = vmatprep.mubr.f32.mxu0 0.0
          %1478 = vmatmul.mubr.f32.gmra.mrb[0].mxu0 %v1346
          %v1479 = vpop.f32.mrb[0].mxu0
          %v1480 = vadd.f32 %v1401, %v1479
          %v1481 = vpop.f32.mrb[0].mxu0
          %1482 = vmatprep.mubr.f32.mxu0 0.0
          %1483 = vmatmul.mubr.f32.gmra.mrb[0].mxu0 %v1347
          %v1484 = vpop.f32.mrb[0].mxu0
          %v1485 = vadd.f32 %v1401, %v1484
          %v1486 = vpop.f32.mrb[0].mxu0
          %1487 = vmatprep.mubr.f32.mxu0 0.0
          %1488 = vmatmul.mubr.f32.gmra.mrb[0].mxu0 %v1348
          %v1489 = vpop.f32.mrb[0].mxu0
          %v1490 = vadd.f32 %v1401, %v1489
          %v1491 = vpop.f32.mrb[0].mxu0
          %1492 = vmatprep.mubr.f32.mxu0 0.0
          %1493 = vmatmul.mubr.f32.gmra.mrb[0].mxu0 %v1349
          %v1494 = vpop.f32.mrb[0].mxu0
          %v1495 = vadd.f32 %v1401, %v1494
          %v1496 = vpop.f32.mrb[0].mxu0
          %1497 = vmatprep.mubr.f32.mxu0 0.0
          %1498 = vmatmul.mubr.f32.gmra.mrb[0].mxu0 %v1350
          %v1499 = vpop.f32.mrb[0].mxu0
          %v1500 = vadd.f32 %v1401, %v1499
          %v1501 = vpop.f32.mrb[0].mxu0
          %1502 = vmatprep.mubr.f32.mxu0 0.0
          %1503 = vmatmul.mubr.f32.gmra.mrb[0].mxu0 %v1351
          %v1504 = vpop.f32.mrb[0].mxu0
          %v1505 = vadd.f32 %v1401, %v1504
          %v1506 = vpop.f32.mrb[0].mxu0
          %1507 = vmatprep.mubr.f32.mxu0 0.0
          %1508 = vmatmul.mubr.f32.gmra.mrb[0].mxu0 %v1352
          %v1509 = vpop.f32.mrb[0].mxu0
          %v1510 = vadd.f32 %v1401, %v1509
          %v1511 = vpop.f32.mrb[0].mxu0
          %1512 = vmatprep.mubr.f32.mxu0 0.0
          %1513 = vmatmul.mubr.f32.gmra.mrb[0].mxu0 %v1353
          %v1514 = vpop.f32.mrb[0].mxu0
          %v1515 = vadd.f32 %v1401, %v1514
          %v1516 = vpop.f32.mrb[0].mxu0
          %1517 = vmatprep.mubr.f32.mxu0 0.0
          %1518 = vmatmul.mubr.f32.gmra.mrb[0].mxu0 %v1354
          %v1519 = vpop.f32.mrb[0].mxu0
          %v1520 = vadd.f32 %v1401, %v1519
          %v1521 = vpop.f32.mrb[0].mxu0
          %1522 = vmatprep.mubr.f32.mxu0 0.0
          %1523 = vmatmul.mubr.f32.gmra.mrb[0].mxu0 %v1355
          %v1524 = vpop.f32.mrb[0].mxu0
          %v1525 = vadd.f32 %v1401, %v1524
          %v1526 = vpop.f32.mrb[0].mxu0
          %1527 = vmatprep.mubr.f32.mxu0 0.0
          %1528 = vmatmul.mubr.f32.gmra.mrb[0].mxu0 %v1356
          %v1529 = vpop.f32.mrb[0].mxu0
          %v1530 = vadd.f32 %v1401, %v1529
          %v1531 = vpop.f32.mrb[0].mxu0
          %1532 = vmatprep.mubr.f32.mxu0 0.0
          %1533 = vmatmul.mubr.f32.gmra.mrb[0].mxu0 %v1357
          %v1534 = vpop.f32.mrb[0].mxu0
          %v1535 = vadd.f32 %v1401, %v1534
          %v1536 = vpop.f32.mrb[0].mxu0
          %1537 = vmatprep.mubr.f32.mxu0 0.0
          %1538 = vmatmul.mubr.f32.gmra.mrb[0].mxu0 %v1358
          %v1539 = vpop.f32.mrb[0].mxu0
          %v1540 = vadd.f32 %v1401, %v1539
          %v1541 = vpop.f32.mrb[0].mxu0
          %1542 = vmatprep.mubr.f32.mxu0 0.0
          %1543 = vmatmul.mubr.f32.gmra.mrb[0].mxu0 %v1359
          %v1544 = vpop.f32.mrb[0].mxu0
          %v1545 = vadd.f32 %v1401, %v1544
          %v1546 = vpop.f32.mrb[0].mxu0
          %1547 = vdwg.mxu0
          %1548 = vst [vmem:[%s487] sm:$0xff] %v1470
          %1549 = vst [vmem:[%s487 + $0x8] sm:$0xff] %v1475
          %1550 = vst [vmem:[%s487 + $0x10] sm:$0xff] %v1480
          %1551 = vst [vmem:[%s487 + $0x18] sm:$0xff] %v1485
          %1552 = vst [vmem:[%s487 + $0x20] sm:$0xff] %v1490
          %1553 = vst [vmem:[%s487 + $0x28] sm:$0xff] %v1495
          %1554 = vst [vmem:[%s487 + $0x30] sm:$0xff] %v1500
          %1555 = vst [vmem:[%s487 + $0x38] sm:$0xff] %v1505
          %1556 = vst [vmem:[%s487 + $0x40] sm:$0xff] %v1510
          %1557 = vst [vmem:[%s487 + $0x48] sm:$0xff] %v1515
          %1558 = vst [vmem:[%s487 + $0x50] sm:$0xff] %v1520
          %1559 = vst [vmem:[%s487 + $0x58] sm:$0xff] %v1525
          %1560 = vst [vmem:[%s487 + $0x60] sm:$0xff] %v1530
          %1561 = vst [vmem:[%s487 + $0x68] sm:$0xff] %v1535
          %1562 = vst [vmem:[%s487 + $0x70] sm:$0xff] %v1540
          %1563 = vst [vmem:[%s487 + $0x78] sm:$0xff] %v1545
        $region96: #{tpu_custom_call.1} parent=63 // pred_fallthru
          _
        %s1564 = sand.u32 %s287, 1
        %s1565 = scalar_lea.sflag [#allocation5], %s1564
        %s1566 = sand.u32 %s287, 1
        %s1567 = smul.addr %s1566, 128
        %s1568 = scalar_lea.vmem [#allocation14], %s1567
        // Predicated region
        $region97: #{tpu_custom_call.1} parent=63 // pred_check
          %p1569 = pneg %p297
        $region98: #{tpu_custom_call.1} parent=63 // pred_check_branch
          %1571 = sbr.rel (%p1569) target = $region100
        $region99: #{tpu_custom_call.1} parent=63 // pred_region
          %s1572 = smul.u32 16, %s35
          %s1574 = ssub.s32 2048, 2048
          %1575 = vsyncadd %s1565, %s1574
          %s1576 = smul.addr %s1572, 128
          %s1577 = scalar_lea.hbm %s11, %s1576
          %s1578 = sshll.u32 %s1568, 4
          %s1579 = int_to_ptr.vmem [resolvable:$true] %s1578
          %1584 = dma.vmem_to_hbm [thread:$0]  %s1579, 2048, %s1577, %s1565, 128, 128, 8
        $region100: #{tpu_custom_call.1} parent=63 // pred_fallthru
          _
      $region64: #{tpu_custom_call.1} parent=5 // pred_fallthru
        _
      %p1585 = scmp.le.s32.totalorder 2, %s26
      // Predicated region
      $region101: #{tpu_custom_call.1} parent=5 // pred_check
        %p1586 = pneg %p1585
      $region102: #{tpu_custom_call.1} parent=5 // pred_check_branch
        %1588 = sbr.rel (%p1586) target = $region104
      $region103: #{tpu_custom_call.1} parent=5 // pred_region
        %s1589 = ssub.s32 %s26, 2
        // Predicated region
        $region105: #{tpu_custom_call.1} parent=103 // pred_check
          %p1590 = pneg %p303
        $region106: #{tpu_custom_call.1} parent=103 // pred_check_branch
          %1592 = sbr.rel (%p1590) target = $region108
        $region107: #{tpu_custom_call.1} parent=103 // pred_region
          %s1593 = sand.u32 %s288, 1
          %s1594 = scalar_lea.sflag [#allocation5], %s1593
          %s1595 = sand.u32 %s288, 1
          %s1596 = smul.addr %s1595, 128
          %s1597 = scalar_lea.vmem [#allocation14], %s1596
          %1598 = dma.done %s1594, 2048
        $region108: #{tpu_custom_call.1} parent=103 // pred_fallthru
          _
      $region104: #{tpu_custom_call.1} parent=5 // pred_fallthru
        _
    $region6: #{tpu_custom_call.1} parent=1 // loop_footer
      %s30 = sadd.s32 1, %s26
    $region7: #{tpu_custom_call.1} parent=1 // loop_footer_branch
      %25 = sbr.rel target = $region3
    $region8: #{tpu_custom_call.1} parent=1 // loop_exit
      _
    %1599 = vsyncpa [#allocation4], 1
    %s1600 = scalar_lea.sflag [#allocation4], 1
    %1601 = vsyncpa %s1600, 1
    %1602 = vsyncpa [#allocation7], 1
    %1603 = vsyncpa [#allocation10], 1
    %1604 = vsyncpa [#allocation13], 1
    %1605 = vsyncpa [#allocation5], 1
    %s1606 = scalar_lea.sflag [#allocation5], 1
    %1607 = vsyncpa %s1606, 1

</llo_original>
